<compile_context>
chip_gen: v6e
topology: v6e:2x2x1
jax: 0.10.0
libtpu: 0.0.40
codegen_flags: <defaults>
</compile_context>

<pallas_src>
import functools

import jax
import jax.numpy as jnp
from jax.experimental import pallas as pl
from jax.experimental.pallas import tpu as pltpu

EMB = 768                    # emb_size
ATT = 144                    # att_size
HID = 256                    # hidden width of every Linear
FEAT = 2 * EMB + 2 * ATT     # 1824


def _round_up(n, m):
    return ((n + m - 1) // m) * m


def _chip_kind():
    try:
        return (jax.devices()[0].device_kind or "").lower()
    except Exception:
        return ""


def _is_v6e():
    return "v6" in _chip_kind()


def _vmem_limit_bytes(tb, x_itemsize):
    """Explicit scoped-VMEM budget for the chosen batch tile."""
    x_bytes = 2 * tb * FEAT * x_itemsize          # double-buffered x tile
    w_bytes = 2 * 2 * (FEAT * 2 * HID)            # bf16 weights, 2 buffers (upper bound)
    inter_bytes = 8 * tb * HID * 4                # f32 intermediates + headroom
    out_bytes = 2 * tb * 4
    est = int(1.25 * (x_bytes + w_bytes + inter_bytes + out_bytes)) + (2 << 20)
    # v7x: 64 MiB physical / 32 MiB scoped default per TC -> keep <= ~48 MiB.
    cap = (48 << 20) if "v7" in _chip_kind() else (96 << 20)
    return max(32 << 20, min(est, cap))


# --------------------------------------------------------------------------
# Kernels
# --------------------------------------------------------------------------

def _kernel_split(x_ref,                     # [TB, 1824]  native dtype
                  w_q_ref, b_q_ref,          # fused quant_hidden|quant_att
                  w_eh_ref,                  # ent_hidden
                  w_ea_ref, b_e_ref,         # ent_att (+ fused ent bias)
                  w_r_ref, b_r_ref,          # relation
                  out_ref):                  # [TB, 1]     f32
    # In-kernel cast (VPU, hidden under the DMA) -> no standalone HBM cast op.
    xb = x_ref[...].astype(jnp.bfloat16)
    # Static, lane-aligned slices (offsets 0/768/1536 are multiples of 128).
    x_ent = xb[:, :EMB]                      # [TB, 768]
    x_qa = xb[:, EMB:]                       # [TB, 1056] (quant emb ++ att)
    x_att = xb[:, 2 * EMB:]                  # [TB, 288]

    # quant_rep = tanh(quant_hidden(x[:,768:1536]) + quant_att(x[:,1536:]))
    quant_rep = jnp.tanh(
        jnp.dot(x_qa, w_q_ref[...], preferred_element_type=jnp.float32)
        + b_q_ref[...])

    # ent_rep = tanh(ent_hidden(x[:,:768]) + ent_att(x[:,1536:]))
    ent_rep = jnp.tanh(
        jnp.dot(x_ent, w_eh_ref[...], preferred_element_type=jnp.float32)
        + jnp.dot(x_att, w_ea_ref[...], preferred_element_type=jnp.float32)
        + b_e_ref[...])

    # ent = relation(ent_rep)   (intentional bf16 rounding before the MXU pass)
    ent = (jnp.dot(ent_rep.astype(jnp.bfloat16), w_r_ref[...],
                   preferred_element_type=jnp.float32)
           + b_r_ref[...])

    # bmm([B,1,256],[B,256,1]) == row-wise dot product -> [B, 1]
    logit = jnp.sum(quant_rep * ent, axis=-1, keepdims=True)
    out_ref[...] = jax.nn.sigmoid(logit).astype(out_ref.dtype)


def _kernel_fused(x_ref,                     # [TB, 1824]  native dtype
                  w_all_ref, b_all_ref,      # zero-padded stage-1 [1824, 512]
                  w_r_ref, b_r_ref,          # relation
                  out_ref):                  # [TB, 1]     f32
    xb = x_ref[...].astype(jnp.bfloat16)
    # One lane-dense K=1824, N=512 MXU pass replaces three stage-1 matmuls.
    rep = jnp.tanh(
        jnp.dot(xb, w_all_ref[...], preferred_element_type=jnp.float32)
        + b_all_ref[...])
    quant_rep = rep[:, :HID]                 # cols 0:256   (lane-aligned)
    ent_rep = rep[:, HID:]                   # cols 256:512 (lane-aligned)

    ent = (jnp.dot(ent_rep.astype(jnp.bfloat16), w_r_ref[...],
                   preferred_element_type=jnp.float32)
           + b_r_ref[...])

    logit = jnp.sum(quant_rep * ent, axis=-1, keepdims=True)
    out_ref[...] = jax.nn.sigmoid(logit).astype(out_ref.dtype)


# --------------------------------------------------------------------------
# pallas_call wrapper
# --------------------------------------------------------------------------

@functools.partial(jax.jit, static_argnums=(2, 3, 4))
def _forward_impl(x, prepared, tb, fuse_stage1, vmem_limit):
    B = x.shape[0]
    grid = (pl.cdiv(B, tb),)

    const2 = lambda i: (0, 0)                 # resident weights/biases
    x_spec = pl.BlockSpec((tb, FEAT), lambda i: (i, 0))
    out_spec = pl.BlockSpec((tb, 1), lambda i: (i, 0))

    if fuse_stage1:
        kernel = _kernel_fused
        in_specs = [
            x_spec,
            pl.BlockSpec((FEAT, 2 * HID), const2),     # w_all [1824, 512]
            pl.BlockSpec((1, 2 * HID), const2),        # b_all
            pl.BlockSpec((HID, HID), const2),          # w_r
            pl.BlockSpec((1, HID), const2),            # b_r
        ]
        args = (x, prepared["w_all"], prepared["b_all"],
                prepared["w_r"], prepared["b_r"])
    else:
        kernel = _kernel_split
        in_specs = [
            x_spec,
            pl.BlockSpec((2 * ATT + EMB, HID), const2),  # w_q  [1056, 256]
            pl.BlockSpec((1, HID), const2),              # b_q
            pl.BlockSpec((EMB, HID), const2),            # w_eh [768, 256]
            pl.BlockSpec((2 * ATT, HID), const2),        # w_ea [288, 256]
            pl.BlockSpec((1, HID), const2),              # b_e
            pl.BlockSpec((HID, HID), const2),            # w_r  [256, 256]
            pl.BlockSpec((1, HID), const2),              # b_r
        ]
        args = (x, prepared["w_q"], prepared["b_q"], prepared["w_eh"],
                prepared["w_ea"], prepared["b_e"],
                prepared["w_r"], prepared["b_r"])

    return pl.pallas_call(
        kernel,
        out_shape=jax.ShapeDtypeStruct((B, 1), jnp.float32),
        grid_spec=pltpu.PrefetchScalarGridSpec(
            num_scalar_prefetch=0,
            grid=grid,
            in_specs=in_specs,
            out_specs=out_spec,
        ),
        compiler_params=pltpu.CompilerParams(
            dimension_semantics=("parallel",),
            vmem_limit_bytes=vmem_limit),
    )(*args)


def classifier_forward(x, prepared, tile_b=1024, fuse_stage1=None):
    """x: [B, 1824] (any float dtype, no wrapper-side cast).  Returns [B, 1] f32."""
    B, F = x.shape
    assert F == FEAT
    if fuse_stage1 is None:
        # Zero-padded stage-1 fusion is only a win where the kernel is
        # HBM-bound (v6e); keep the split 3-matmul structure on MXU-bound v5e
        # and near-ridge v7x.
        fuse_stage1 = _is_v6e()
    # Batch tile: multiple of 16 rows (bf16 sublane packing) and at most
    # ceil(B/2) so there are >= 2 grid steps when the batch allows it
    # (megacore sharding on v7x).
    half_b = _round_up(max(1, -(-B // 2)), 16)
    tb = max(16, min(int(tile_b), half_b))
    vmem_limit = _vmem_limit_bytes(tb, x.dtype.itemsize)
    return _forward_impl(x, prepared, tb, bool(fuse_stage1), vmem_limit)


# --------------------------------------------------------------------------
# Parameter construction / preparation
# --------------------------------------------------------------------------

def _linear_init(key, fan_in, fan_out):
    """Deterministic init mimicking torch.nn.Linear (uniform +-1/sqrt(fan_in)).
    Weights stored [in, out] (transposed vs. torch) for right-matmuls."""
    kw, kb = jax.random.split(key)
    bound = 1.0 / (fan_in ** 0.5)
    w = jax.random.uniform(kw, (fan_in, fan_out), jnp.float32, -bound, bound)
    b = jax.random.uniform(kb, (1, fan_out), jnp.float32, -bound, bound)
    return w, b


def init_params(key):
    keys = jax.random.split(key, 5)
    w_qh, b_qh = _linear_init(keys[0], EMB, HID)        # quant_hidden
    w_eh, b_eh = _linear_init(keys[1], EMB, HID)        # ent_hidden
    w_qa, b_qa = _linear_init(keys[2], 2 * ATT, HID)    # quant_att
    w_ea, b_ea = _linear_init(keys[3], 2 * ATT, HID)    # ent_att
    w_r, b_r = _linear_init(keys[4], HID, HID)          # relation
    return dict(w_qh=w_qh, b_qh=b_qh, w_eh=w_eh, b_eh=b_eh,
                w_qa=w_qa, b_qa=b_qa, w_ea=w_ea, b_ea=b_ea,
                w_r=w_r, b_r=b_r)


def prepare_params(p):
    """Host-side one-time prep: fuse the contiguous quant path, fold biases,
    build the zero-padded stage-1 weight for the fused (v6e) variant, and cast
    matmul weights to bf16 (biases stay f32 for the f32 accumulators)."""
    w_q = jnp.concatenate([p["w_qh"], p["w_qa"]], axis=0)   # [1056, 256]
    b_q = (p["b_qh"] + p["b_qa"]).astype(jnp.float32)
    b_e = (p["b_eh"] + p["b_ea"]).astype(jnp.float32)

    # W_all = [[0, w_eh], [w_qh, 0], [w_qa, w_ea]]  -> [1824, 512]
    # cols 0:256 = quant pre-activation, cols 256:512 = ent pre-activation.
    w_all = jnp.zeros((FEAT, 2 * HID), jnp.float32)
    w_all = w_all.at[:EMB, HID:].set(p["w_eh"])
    w_all = w_all.at[EMB:2 * EMB, :HID].set(p["w_qh"])
    w_all = w_all.at[2 * EMB:, :HID].set(p["w_qa"])
    w_all = w_all.at[2 * EMB:, HID:].set(p["w_ea"])
    b_all = jnp.concatenate([b_q, b_e], axis=1)             # [1, 512]

    return dict(
        # split (v5e / v7x) variant
        w_q=w_q.astype(jnp.bfloat16), b_q=b_q,
        w_eh=p["w_eh"].astype(jnp.bfloat16),
        w_ea=p["w_ea"].astype(jnp.bfloat16), b_e=b_e,
        # fused stage-1 (v6e) variant
        w_all=w_all.astype(jnp.bfloat16), b_all=b_all,
        # shared
        w_r=p["w_r"].astype(jnp.bfloat16),
        b_r=p["b_r"].astype(jnp.float32),
    )


# --------------------------------------------------------------------------
# References
# --------------------------------------------------------------------------

def reference_forward_f32(x, p):
    """Pure-f32 reference matching the PyTorch module."""
    x_ent, x_quant, x_att = x[:, :EMB], x[:, EMB:2 * EMB], x[:, 2 * EMB:]
    quant_rep = jnp.tanh(x_quant @ p["w_qh"] + p["b_qh"]
                         + x_att @ p["w_qa"] + p["b_qa"])
    ent_rep = jnp.tanh(x_ent @ p["w_eh"] + p["b_eh"]
                       + x_att @ p["w_ea"] + p["b_ea"])
    ent = ent_rep @ p["w_r"] + p["b_r"]
    return jax.nn.sigmoid(jnp.sum(quant_rep * ent, axis=-1, keepdims=True))


def reference_forward_bf16(x, prepared):
    """Emulates the kernel's bf16-operand / f32-accumulate numerics."""
    f32 = jnp.float32
    xb = x.astype(jnp.bfloat16).astype(f32)
    x_ent, x_qa, x_att = xb[:, :EMB], xb[:, EMB:], xb[:, 2 * EMB:]
    quant_rep = jnp.tanh(x_qa @ prepared["w_q"].astype(f32) + prepared["b_q"])
    ent_rep = jnp.tanh(x_ent @ prepared["w_eh"].astype(f32)
                       + x_att @ prepared["w_ea"].astype(f32)
                       + prepared["b_e"])
    ent = (ent_rep.astype(jnp.bfloat16).astype(f32) @ prepared["w_r"].astype(f32)
           + prepared["b_r"])
    return jax.nn.sigmoid(jnp.sum(quant_rep * ent, axis=-1, keepdims=True))


# --------------------------------------------------------------------------
# Smoke test
# --------------------------------------------------------------------------

if __name__ == "__main__":
    key = jax.random.PRNGKey(0)
    k_x, k_p = jax.random.split(key)

    B = 8  # small batch; feature dim is fixed at 2*768 + 2*144 = 1824
    x = jax.random.normal(k_x, (B, FEAT), jnp.float32)
    params = init_params(k_p)
    prepared = prepare_params(params)

    ref_bf16 = reference_forward_bf16(x, prepared)
    ref_f32 = reference_forward_f32(x, params)

    # Validate BOTH kernel variants on this device (production auto-selects by
    # chip generation, but each path must be numerically correct everywhere).
    for fuse in (False, True):
        prob = jax.block_until_ready(
            classifier_forward(x, prepared, fuse_stage1=fuse))
        assert prob.shape == (B, 1)
        assert bool(jnp.all(jnp.isfinite(prob)))
        # Tight check vs the bf16-emulated reference (same numerics).
        assert jnp.allclose(prob, ref_bf16, atol=1e-3, rtol=1e-3), (
            fuse, float(jnp.max(jnp.abs(prob - ref_bf16))))
        # Loose check vs the pure-f32 reference (bf16 matmul operands).
        assert jnp.allclose(prob, ref_f32, atol=3e-2, rtol=3e-2), (
            fuse, float(jnp.max(jnp.abs(prob - ref_f32))))

    # Auto-selected path (device-kind based), and a bf16-activation call to
    # exercise the no-cast fast path.
    prob_auto = jax.block_until_ready(classifier_forward(x, prepared))
    assert jnp.allclose(prob_auto, ref_bf16, atol=1e-3, rtol=1e-3)
    prob_bf16_in = jax.block_until_ready(
        classifier_forward(x.astype(jnp.bfloat16), prepared))
    assert jnp.allclose(prob_bf16_in, ref_bf16, atol=1e-3, rtol=1e-3)

    print("KERNEL_OK")
</pallas_src>

<mosaic_0001>
module attributes {stable_mosaic.version = 11 : i64} {
  func.func @_kernel_split(%arg0: i32, %arg1: memref<16x1824xf32, #tpu.memory_space<vmem>>, %arg2: memref<1056x256xbf16, #tpu.memory_space<vmem>>, %arg3: memref<1x256xf32, #tpu.memory_space<vmem>>, %arg4: memref<768x256xbf16, #tpu.memory_space<vmem>>, %arg5: memref<288x256xbf16, #tpu.memory_space<vmem>>, %arg6: memref<1x256xf32, #tpu.memory_space<vmem>>, %arg7: memref<256x256xbf16, #tpu.memory_space<vmem>>, %arg8: memref<1x256xf32, #tpu.memory_space<vmem>>, %arg9: memref<16x1xf32, #tpu.memory_space<vmem>>) attributes {dimension_semantics = [#tpu.dimension_semantics<parallel>], iteration_bounds = array<i64: 1>, scalar_prefetch = 0 : i64, scratch_operands = 0 : i64, tpu.core_type = #tpu.core_type<tc>, window_params = [{transform_indices = @transform_0, window_bounds = array<i64: 16, 1824>}, {pipeline_mode = #tpu.pipeline_mode<synchronous>, transform_indices = @transform_1, window_bounds = array<i64: 1056, 256>}, {pipeline_mode = #tpu.pipeline_mode<synchronous>, transform_indices = @transform_2, window_bounds = array<i64: 1, 256>}, {pipeline_mode = #tpu.pipeline_mode<synchronous>, transform_indices = @transform_3, window_bounds = array<i64: 768, 256>}, {pipeline_mode = #tpu.pipeline_mode<synchronous>, transform_indices = @transform_4, window_bounds = array<i64: 288, 256>}, {pipeline_mode = #tpu.pipeline_mode<synchronous>, transform_indices = @transform_5, window_bounds = array<i64: 1, 256>}, {pipeline_mode = #tpu.pipeline_mode<synchronous>, transform_indices = @transform_6, window_bounds = array<i64: 256, 256>}, {pipeline_mode = #tpu.pipeline_mode<synchronous>, transform_indices = @transform_7, window_bounds = array<i64: 1, 256>}, {transform_indices = @transform_8, window_bounds = array<i64: 16, 1>}]} {
    %c0 = arith.constant 0 : index
    %c0_0 = arith.constant 0 : index
    %0 = vector.load %arg1[%c0, %c0_0] : memref<16x1824xf32, #tpu.memory_space<vmem>>, vector<16x1824xf32>
    %1 = arith.truncf %0 : vector<16x1824xf32> to vector<16x1824xbf16>
    %2 = vector.extract_strided_slice %1 {offsets = [0, 0], sizes = [16, 768], strides = [1, 1]} : vector<16x1824xbf16> to vector<16x768xbf16>
    %3 = vector.extract_strided_slice %1 {offsets = [0, 768], sizes = [16, 1056], strides = [1, 1]} : vector<16x1824xbf16> to vector<16x1056xbf16>
    %4 = vector.extract_strided_slice %1 {offsets = [0, 1536], sizes = [16, 288], strides = [1, 1]} : vector<16x1824xbf16> to vector<16x288xbf16>
    %c0_1 = arith.constant 0 : index
    %c0_2 = arith.constant 0 : index
    %5 = vector.load %arg2[%c0_1, %c0_2] : memref<1056x256xbf16, #tpu.memory_space<vmem>>, vector<1056x256xbf16>
    %cst = arith.constant dense<0.000000e+00> : vector<16x256xf32>
    %6 = tpu.matmul %3, %5, %cst {dimension_numbers = #tpu.dot_dimension_numbers<[1], [0], [0], [1], [0, 0, 1, 1], [], []>} : vector<16x1056xbf16>, vector<1056x256xbf16>, vector<16x256xf32> -> vector<16x256xf32>
    %c0_3 = arith.constant 0 : index
    %c0_4 = arith.constant 0 : index
    %7 = vector.load %arg3[%c0_3, %c0_4] : memref<1x256xf32, #tpu.memory_space<vmem>>, vector<1x256xf32>
    %8 = vector.broadcast %7 : vector<1x256xf32> to vector<16x256xf32>
    %9 = arith.addf %6, %8 : vector<16x256xf32>
    %10 = math.tanh %9 : vector<16x256xf32>
    %c0_5 = arith.constant 0 : index
    %c0_6 = arith.constant 0 : index
    %11 = vector.load %arg4[%c0_5, %c0_6] : memref<768x256xbf16, #tpu.memory_space<vmem>>, vector<768x256xbf16>
    %cst_7 = arith.constant dense<0.000000e+00> : vector<16x256xf32>
    %12 = tpu.matmul %2, %11, %cst_7 {dimension_numbers = #tpu.dot_dimension_numbers<[1], [0], [0], [1], [0, 0, 1, 1], [], []>} : vector<16x768xbf16>, vector<768x256xbf16>, vector<16x256xf32> -> vector<16x256xf32>
    %c0_8 = arith.constant 0 : index
    %c0_9 = arith.constant 0 : index
    %13 = vector.load %arg5[%c0_8, %c0_9] : memref<288x256xbf16, #tpu.memory_space<vmem>>, vector<288x256xbf16>
    %cst_10 = arith.constant dense<0.000000e+00> : vector<16x256xf32>
    %14 = tpu.matmul %4, %13, %cst_10 {dimension_numbers = #tpu.dot_dimension_numbers<[1], [0], [0], [1], [0, 0, 1, 1], [], []>} : vector<16x288xbf16>, vector<288x256xbf16>, vector<16x256xf32> -> vector<16x256xf32>
    %15 = arith.addf %12, %14 : vector<16x256xf32>
    %c0_11 = arith.constant 0 : index
    %c0_12 = arith.constant 0 : index
    %16 = vector.load %arg6[%c0_11, %c0_12] : memref<1x256xf32, #tpu.memory_space<vmem>>, vector<1x256xf32>
    %17 = vector.broadcast %16 : vector<1x256xf32> to vector<16x256xf32>
    %18 = arith.addf %15, %17 : vector<16x256xf32>
    %19 = math.tanh %18 : vector<16x256xf32>
    %20 = arith.truncf %19 : vector<16x256xf32> to vector<16x256xbf16>
    %c0_13 = arith.constant 0 : index
    %c0_14 = arith.constant 0 : index
    %21 = vector.load %arg7[%c0_13, %c0_14] : memref<256x256xbf16, #tpu.memory_space<vmem>>, vector<256x256xbf16>
    %cst_15 = arith.constant dense<0.000000e+00> : vector<16x256xf32>
    %22 = tpu.matmul %20, %21, %cst_15 {dimension_numbers = #tpu.dot_dimension_numbers<[1], [0], [0], [1], [0, 0, 1, 1], [], []>} : vector<16x256xbf16>, vector<256x256xbf16>, vector<16x256xf32> -> vector<16x256xf32>
    %c0_16 = arith.constant 0 : index
    %c0_17 = arith.constant 0 : index
    %23 = vector.load %arg8[%c0_16, %c0_17] : memref<1x256xf32, #tpu.memory_space<vmem>>, vector<1x256xf32>
    %24 = vector.broadcast %23 : vector<1x256xf32> to vector<16x256xf32>
    %25 = arith.addf %22, %24 : vector<16x256xf32>
    %26 = arith.mulf %10, %25 : vector<16x256xf32>
    %cst_18 = arith.constant dense<0.000000e+00> : vector<16xf32>
    %27 = vector.multi_reduction <add>, %26, %cst_18 [1] : vector<16x256xf32> to vector<16xf32>
    %28 = vector.shape_cast %27 : vector<16xf32> to vector<16x1xf32>
    %29 = arith.negf %28 : vector<16x1xf32>
    %30 = math.exp %29 : vector<16x1xf32>
    %cst_19 = arith.constant 1.000000e+00 : f32
    %31 = vector.broadcast %cst_19 : f32 to vector<16x1xf32>
    %32 = arith.addf %31, %30 : vector<16x1xf32>
    %33 = arith.divf %31, %32 : vector<16x1xf32>
    %c0_20 = arith.constant 0 : index
    %c0_21 = arith.constant 0 : index
    %34 = vector.load %arg9[%c0_20, %c0_21] : memref<16x1xf32, #tpu.memory_space<vmem>>, vector<16x1xf32>
    tpu.vector_store %arg9[%c0_20, %c0_21], %33 {strides = array<i32>} : memref<16x1xf32, #tpu.memory_space<vmem>>, vector<16x1xf32>,
    return
  }
  func.func @transform_0(%arg0: i32) -> (i32, i32) {
    %c0_i32 = arith.constant 0 : i32
    %c0_i32_0 = arith.constant 0 : i32
    return %arg0, %c0_i32 : i32, i32
  }
  func.func @transform_1(%arg0: i32) -> (i32, i32) {
    %c0_i32 = arith.constant 0 : i32
    %c0_i32_0 = arith.constant 0 : i32
    %c0_i32_1 = arith.constant 0 : i32
    return %c0_i32, %c0_i32_0 : i32, i32
  }
  func.func @transform_2(%arg0: i32) -> (i32, i32) {
    %c0_i32 = arith.constant 0 : i32
    %c0_i32_0 = arith.constant 0 : i32
    %c0_i32_1 = arith.constant 0 : i32
    return %c0_i32, %c0_i32_0 : i32, i32
  }
  func.func @transform_3(%arg0: i32) -> (i32, i32) {
    %c0_i32 = arith.constant 0 : i32
    %c0_i32_0 = arith.constant 0 : i32
    %c0_i32_1 = arith.constant 0 : i32
    return %c0_i32, %c0_i32_0 : i32, i32
  }
  func.func @transform_4(%arg0: i32) -> (i32, i32) {
    %c0_i32 = arith.constant 0 : i32
    %c0_i32_0 = arith.constant 0 : i32
    %c0_i32_1 = arith.constant 0 : i32
    return %c0_i32, %c0_i32_0 : i32, i32
  }
  func.func @transform_5(%arg0: i32) -> (i32, i32) {
    %c0_i32 = arith.constant 0 : i32
    %c0_i32_0 = arith.constant 0 : i32
    %c0_i32_1 = arith.constant 0 : i32
    return %c0_i32, %c0_i32_0 : i32, i32
  }
  func.func @transform_6(%arg0: i32) -> (i32, i32) {
    %c0_i32 = arith.constant 0 : i32
    %c0_i32_0 = arith.constant 0 : i32
    %c0_i32_1 = arith.constant 0 : i32
    return %c0_i32, %c0_i32_0 : i32, i32
  }
  func.func @transform_7(%arg0: i32) -> (i32, i32) {
    %c0_i32 = arith.constant 0 : i32
    %c0_i32_0 = arith.constant 0 : i32
    %c0_i32_1 = arith.constant 0 : i32
    return %c0_i32, %c0_i32_0 : i32, i32
  }
  func.func @transform_8(%arg0: i32) -> (i32, i32) {
    %c0_i32 = arith.constant 0 : i32
    %c0_i32_0 = arith.constant 0 : i32
    return %arg0, %c0_i32 : i32, i32
  }
}

</mosaic_0001>

<llo_original>
// kernel: _forward_impl.1
$region0: #{_forward_impl.1}
  #allocation0 [shape = 'u32[]', space=smem, size = 0x4, offset = 0x4, fixed_abs, tag = 'smem constant byte address 0x4 - core index']
  #allocation1 [shape = 'u32[144,128]{1,0:T(1,128)}', space=vmem, size = 0x12000, scoped, tag = 'internal scratch']
  %s0 = inlined_call_operand.hbm [shape: f32[8,1824], index: 0, kind: input, shape index: {}]
  %s1 = inlined_call_operand.hbm [shape: bf16[1056,256], index: 1, kind: input, shape index: {}]
  %s2 = inlined_call_operand.vmem [shape: f32[1,256], index: 2, kind: input, shape index: {}]
  %s3 = inlined_call_operand.hbm [shape: bf16[768,256], index: 3, kind: input, shape index: {}]
  %s4 = inlined_call_operand.hbm [shape: bf16[288,256], index: 4, kind: input, shape index: {}]
  %s5 = inlined_call_operand.hbm [shape: f32[1,256], index: 5, kind: input, shape index: {}]
  %s6 = inlined_call_operand.hbm [shape: bf16[256,256], index: 6, kind: input, shape index: {}]
  %s7 = inlined_call_operand.vmem [shape: f32[1,256], index: 7, kind: input, shape index: {}]
  %s8 = inlined_call_operand.vmem [shape: f32[8,1], index: 8, kind: output, shape index: {}]
  %s9 = sld [smem:[#allocation0]]
  $region100: #{_forward_impl.1} parent=0
    _
  %s11 = ssub.s32 1, %s9
  %s12 = scalar_select 0, %s11, %s9
  $region1: #{_forward_impl.1} parent=0
    #allocation2 [shape = 'u8[122880]{0}', space=vmem, size = 0x1e000, scoped, tag = 'input window, operand 0, single buffered']
    #allocation3 [shape = 's32[1]{0}', space=sflag, size = 0x4, scoped, tag = 'scoped memory for _forward_impl.1']
    #allocation4 [shape = 'u8[540672]{0}', space=vmem, size = 0x84000, scoped, tag = 'input window, operand 1, single buffered']
    #allocation5 [shape = 's32[1]{0}', space=sflag, size = 0x4, scoped, tag = 'scoped memory for _forward_impl.1']
    #allocation6 [shape = 'u8[393216]{0}', space=vmem, size = 0x60000, scoped, tag = 'input window, operand 3, single buffered']
    #allocation7 [shape = 'u8[147456]{0}', space=vmem, size = 0x24000, scoped, tag = 'input window, operand 4, single buffered']
    #allocation8 [shape = 's32[1]{0}', space=sflag, size = 0x4, scoped, tag = 'scoped memory for _forward_impl.1']
    #allocation9 [shape = 'u8[1024]{0}', space=vmem, size = 0x400, scoped, tag = 'input window, operand 5, single buffered']
    #allocation10 [shape = 'u8[131072]{0}', space=vmem, size = 0x20000, scoped, tag = 'input window, operand 6, single buffered']
    #allocation11 [shape = 's32[1]{0}', space=sflag, size = 0x4, scoped, tag = 'scoped memory for _forward_impl.1']
    #allocation12 [shape = 'u8[8192]{0}', space=vmem, size = 0x2000, scoped, tag = 'output window, operand 0, single buffered']
    %13 = vsyncpa [#allocation3], 0
    %14 = vsyncpa [#allocation5], 0
    %15 = vsyncpa [#allocation8], 0
    %16 = vsyncpa [#allocation11], 0
    // Predicated region
    $region2: #{_forward_impl.1} parent=1 // pred_check
      _
    $region3: #{_forward_impl.1} parent=1 // pred_check_branch
      %18 = sbr.rel (0) target = $region5
    $region4: #{_forward_impl.1} parent=1 // pred_region
      %s20 = ssub.s32 3840, 1920
      %21 = vsyncadd [#allocation3], %s20
      %s22 = sshll.u32 [#allocation2], 4
      %s23 = int_to_ptr.vmem [resolvable:$true] %s22
      %28 = dma.hbm_to_vmem [thread:$0]  %s0, 1920, %s23, [#allocation3], 1920, 1920, 120
    $region5: #{_forward_impl.1} parent=1 // pred_fallthru
      _
    // Predicated region
    $region6: #{_forward_impl.1} parent=1 // pred_check
      _
    $region7: #{_forward_impl.1} parent=1 // pred_check_branch
      %30 = sbr.rel (0) target = $region9
    $region8: #{_forward_impl.1} parent=1 // pred_region
      %s32 = ssub.s32 16896, 16896
      %33 = vsyncadd [#allocation5], %s32
      %s34 = sshll.u32 [#allocation4], 4
      %s35 = int_to_ptr.vmem [resolvable:$true] %s34
      %40 = dma.hbm_to_vmem [thread:$0]  %s1, 16896, %s35, [#allocation5], 128, 128, 8
    $region9: #{_forward_impl.1} parent=1 // pred_fallthru
      _
    // Predicated region
    $region10: #{_forward_impl.1} parent=1 // pred_check
      _
    $region11: #{_forward_impl.1} parent=1 // pred_check_branch
      %42 = sbr.rel (0) target = $region13
    $region12: #{_forward_impl.1} parent=1 // pred_region
      _
    $region13: #{_forward_impl.1} parent=1 // pred_fallthru
      _
    // Predicated region
    $region14: #{_forward_impl.1} parent=1 // pred_check
      _
    $region15: #{_forward_impl.1} parent=1 // pred_check_branch
      %44 = sbr.rel (0) target = $region17
    $region16: #{_forward_impl.1} parent=1 // pred_region
      %s46 = ssub.s32 12288, 12288
      %47 = vsyncadd [#allocation5], %s46
      %s48 = sshll.u32 [#allocation6], 4
      %s49 = int_to_ptr.vmem [resolvable:$true] %s48
      %54 = dma.hbm_to_vmem [thread:$0]  %s3, 12288, %s49, [#allocation5], 128, 128, 8
    $region17: #{_forward_impl.1} parent=1 // pred_fallthru
      _
    // Predicated region
    $region18: #{_forward_impl.1} parent=1 // pred_check
      _
    $region19: #{_forward_impl.1} parent=1 // pred_check_branch
      %56 = sbr.rel (0) target = $region21
    $region20: #{_forward_impl.1} parent=1 // pred_region
      %s58 = ssub.s32 4608, 4608
      %59 = vsyncadd [#allocation8], %s58
      %s60 = sshll.u32 [#allocation7], 4
      %s61 = int_to_ptr.vmem [resolvable:$true] %s60
      %66 = dma.hbm_to_vmem [thread:$0]  %s4, 4608, %s61, [#allocation8], 128, 128, 8
    $region21: #{_forward_impl.1} parent=1 // pred_fallthru
      _
    // Predicated region
    $region22: #{_forward_impl.1} parent=1 // pred_check
      _
    $region23: #{_forward_impl.1} parent=1 // pred_check_branch
      %68 = sbr.rel (0) target = $region25
    $region24: #{_forward_impl.1} parent=1 // pred_region
      %s70 = ssub.s32 32, 32
      %71 = vsyncadd [#allocation8], %s70
      %s73 = sshll.u32 [#allocation9], 4
      %s74 = int_to_ptr.vmem [resolvable:$true] %s73
      %76 = dma.hbm_to_vmem [thread:$0]  %s5, 32, %s74, [#allocation8]
    $region25: #{_forward_impl.1} parent=1 // pred_fallthru
      _
    // Predicated region
    $region26: #{_forward_impl.1} parent=1 // pred_check
      _
    $region27: #{_forward_impl.1} parent=1 // pred_check_branch
      %78 = sbr.rel (0) target = $region29
    $region28: #{_forward_impl.1} parent=1 // pred_region
      %s80 = ssub.s32 4096, 4096
      %81 = vsyncadd [#allocation11], %s80
      %s82 = sshll.u32 [#allocation10], 4
      %s83 = int_to_ptr.vmem [resolvable:$true] %s82
      %88 = dma.hbm_to_vmem [thread:$0]  %s6, 4096, %s83, [#allocation11], 128, 128, 8
    $region29: #{_forward_impl.1} parent=1 // pred_fallthru
      _
    // Predicated region
    $region30: #{_forward_impl.1} parent=1 // pred_check
      _
    $region31: #{_forward_impl.1} parent=1 // pred_check_branch
      %90 = sbr.rel (0) target = $region33
    $region32: #{_forward_impl.1} parent=1 // pred_region
      _
    $region33: #{_forward_impl.1} parent=1 // pred_fallthru
      _
    // Predicated region
    $region34: #{_forward_impl.1} parent=1 // pred_check
      _
    $region35: #{_forward_impl.1} parent=1 // pred_check_branch
      %92 = sbr.rel (0) target = $region37
    $region36: #{_forward_impl.1} parent=1 // pred_region
      %93 = dma.done [#allocation3], 3840
    $region37: #{_forward_impl.1} parent=1 // pred_fallthru
      _
    // Predicated region
    $region38: #{_forward_impl.1} parent=1 // pred_check
      _
    $region39: #{_forward_impl.1} parent=1 // pred_check_branch
      %95 = sbr.rel (0) target = $region41
    $region40: #{_forward_impl.1} parent=1 // pred_region
      %96 = dma.done [#allocation5], 16896
    $region41: #{_forward_impl.1} parent=1 // pred_fallthru
      _
    // Predicated region
    $region42: #{_forward_impl.1} parent=1 // pred_check
      _
    $region43: #{_forward_impl.1} parent=1 // pred_check_branch
      %98 = sbr.rel (0) target = $region45
    $region44: #{_forward_impl.1} parent=1 // pred_region
      %99 = dma.done [#allocation5], 12288
    $region45: #{_forward_impl.1} parent=1 // pred_fallthru
      _
    // Predicated region
    $region46: #{_forward_impl.1} parent=1 // pred_check
      _
    $region47: #{_forward_impl.1} parent=1 // pred_check_branch
      %101 = sbr.rel (0) target = $region49
    $region48: #{_forward_impl.1} parent=1 // pred_region
      %102 = dma.done [#allocation8], 4608
    $region49: #{_forward_impl.1} parent=1 // pred_fallthru
      _
    // Predicated region
    $region50: #{_forward_impl.1} parent=1 // pred_check
      _
    $region51: #{_forward_impl.1} parent=1 // pred_check_branch
      %104 = sbr.rel (0) target = $region53
    $region52: #{_forward_impl.1} parent=1 // pred_region
      %105 = dma.done [#allocation8], 32
    $region53: #{_forward_impl.1} parent=1 // pred_fallthru
      _
    // Predicated region
    $region54: #{_forward_impl.1} parent=1 // pred_check
      _
    $region55: #{_forward_impl.1} parent=1 // pred_check_branch
      %107 = sbr.rel (0) target = $region57
    $region56: #{_forward_impl.1} parent=1 // pred_region
      %108 = dma.done [#allocation11], 4096
    $region57: #{_forward_impl.1} parent=1 // pred_fallthru
      _
    %v110 = vld [vmem:[#allocation2] sm:$0xff]
    %v111 = vld [vmem:[#allocation2 + $0x8] sm:$0xff]
    %v112 = vld [vmem:[#allocation2 + $0x10] sm:$0xff]
    %v113 = vld [vmem:[#allocation2 + $0x18] sm:$0xff]
    %v114 = vld [vmem:[#allocation2 + $0x20] sm:$0xff]
    %v115 = vld [vmem:[#allocation2 + $0x28] sm:$0xff]
    %v116 = vld [vmem:[#allocation2 + $0x30] sm:$0xff]
    %v117 = vld [vmem:[#allocation2 + $0x38] sm:$0xff]
    %v118 = vld [vmem:[#allocation2 + $0x40] sm:$0xff]
    %v119 = vld [vmem:[#allocation2 + $0x48] sm:$0xff]
    %v120 = vld [vmem:[#allocation2 + $0x50] sm:$0xff]
    %v121 = vld [vmem:[#allocation2 + $0x58] sm:$0xff]
    %v122 = vld [vmem:[#allocation2 + $0x60] sm:$0xff]
    %v123 = vld [vmem:[#allocation2 + $0x68] sm:$0xff]
    %v124 = vld [vmem:[#allocation2 + $0x70] sm:$0xff]
    %v125 = vld [vmem:[#allocation2 + $0x78] sm:$0xff]
    %v126 = vld [vmem:[#allocation2 + $0x80] sm:$0xff]
    %v127 = vld [vmem:[#allocation2 + $0x88] sm:$0xff]
    %v128 = vld [vmem:[#allocation2 + $0x90] sm:$0xff]
    %v129 = vld [vmem:[#allocation2 + $0x98] sm:$0xff]
    %v130 = vld [vmem:[#allocation2 + $0xa0] sm:$0xff]
    %v131 = vld [vmem:[#allocation2 + $0xa8] sm:$0xff]
    %v132 = vld [vmem:[#allocation2 + $0xb0] sm:$0xff]
    %v133 = vld [vmem:[#allocation2 + $0xb8] sm:$0xff]
    %v134 = vld [vmem:[#allocation2 + $0xc0] sm:$0xff]
    %v135 = vld [vmem:[#allocation2 + $0xc8] sm:$0xff]
    %v136 = vld [vmem:[#allocation2 + $0xd0] sm:$0xff]
    %v137 = vld [vmem:[#allocation2 + $0xd8] sm:$0xff]
    %v138 = vld [vmem:[#allocation2 + $0xe0] sm:$0xff]
    %v139 = vld [vmem:[#allocation2 + $0xe8] sm:$0xff]
    %v140 = vpack.c.bf16 %v125, %v110
    %v141 = vpack.c.bf16 %v126, %v111
    %v142 = vpack.c.bf16 %v127, %v112
    %v143 = vpack.c.bf16 %v128, %v113
    %v144 = vpack.c.bf16 %v129, %v114
    %v145 = vpack.c.bf16 %v130, %v115
    %v146 = vpack.c.bf16 %v131, %v116
    %v147 = vpack.c.bf16 %v132, %v117
    %v148 = vpack.c.bf16 %v133, %v118
    %v149 = vpack.c.bf16 %v134, %v119
    %v150 = vpack.c.bf16 %v135, %v120
    %v151 = vpack.c.bf16 %v136, %v121
    %v152 = vpack.c.bf16 %v137, %v122
    %v153 = vpack.c.bf16 %v138, %v123
    %v154 = vpack.c.bf16 %v139, %v124
    %v155 = vld [vmem:[#allocation4] sm:$0xff]
    %v156 = vld [vmem:[#allocation4 + $0x8] sm:$0xff]
    %v157 = vld [vmem:[#allocation4 + $0x10] sm:$0xff]
    %v158 = vld [vmem:[#allocation4 + $0x18] sm:$0xff]
    %v159 = vld [vmem:[#allocation4 + $0x20] sm:$0xff]
    %v160 = vld [vmem:[#allocation4 + $0x28] sm:$0xff]
    %v161 = vld [vmem:[#allocation4 + $0x30] sm:$0xff]
    %v162 = vld [vmem:[#allocation4 + $0x38] sm:$0xff]
    %v163 = vld [vmem:[#allocation4 + $0x40] sm:$0xff]
    %v164 = vld [vmem:[#allocation4 + $0x48] sm:$0xff]
    %v165 = vld [vmem:[#allocation4 + $0x50] sm:$0xff]
    %v166 = vld [vmem:[#allocation4 + $0x58] sm:$0xff]
    %v167 = vld [vmem:[#allocation4 + $0x60] sm:$0xff]
    %v168 = vld [vmem:[#allocation4 + $0x68] sm:$0xff]
    %v169 = vld [vmem:[#allocation4 + $0x70] sm:$0xff]
    %v170 = vld [vmem:[#allocation4 + $0x78] sm:$0xff]
    %v171 = vld [vmem:[#allocation4 + $0x80] sm:$0xff]
    %v172 = vld [vmem:[#allocation4 + $0x88] sm:$0xff]
    %v173 = vld [vmem:[#allocation4 + $0x90] sm:$0xff]
    %v174 = vld [vmem:[#allocation4 + $0x98] sm:$0xff]
    %v175 = vld [vmem:[#allocation4 + $0xa0] sm:$0xff]
    %v176 = vld [vmem:[#allocation4 + $0xa8] sm:$0xff]
    %v177 = vld [vmem:[#allocation4 + $0xb0] sm:$0xff]
    %v178 = vld [vmem:[#allocation4 + $0xb8] sm:$0xff]
    %v179 = vld [vmem:[#allocation4 + $0xc0] sm:$0xff]
    %v180 = vld [vmem:[#allocation4 + $0xc8] sm:$0xff]
    %v181 = vld [vmem:[#allocation4 + $0xd0] sm:$0xff]
    %v182 = vld [vmem:[#allocation4 + $0xd8] sm:$0xff]
    %v183 = vld [vmem:[#allocation4 + $0xe0] sm:$0xff]
    %v184 = vld [vmem:[#allocation4 + $0xe8] sm:$0xff]
    %v185 = vld [vmem:[#allocation4 + $0xf0] sm:$0xff]
    %v186 = vld [vmem:[#allocation4 + $0xf8] sm:$0xff]
    %v187 = vld [vmem:[#allocation4 + $0x100] sm:$0xff]
    %v188 = vld [vmem:[#allocation4 + $0x108] sm:$0xff]
    %v189 = vld [vmem:[#allocation4 + $0x110] sm:$0xff]
    %v190 = vld [vmem:[#allocation4 + $0x118] sm:$0xff]
    %v191 = vld [vmem:[#allocation4 + $0x120] sm:$0xff]
    %v192 = vld [vmem:[#allocation4 + $0x128] sm:$0xff]
    %v193 = vld [vmem:[#allocation4 + $0x130] sm:$0xff]
    %v194 = vld [vmem:[#allocation4 + $0x138] sm:$0xff]
    %v195 = vld [vmem:[#allocation4 + $0x140] sm:$0xff]
    %v196 = vld [vmem:[#allocation4 + $0x148] sm:$0xff]
    %v197 = vld [vmem:[#allocation4 + $0x150] sm:$0xff]
    %v198 = vld [vmem:[#allocation4 + $0x158] sm:$0xff]
    %v199 = vld [vmem:[#allocation4 + $0x160] sm:$0xff]
    %v200 = vld [vmem:[#allocation4 + $0x168] sm:$0xff]
    %v201 = vld [vmem:[#allocation4 + $0x170] sm:$0xff]
    %v202 = vld [vmem:[#allocation4 + $0x178] sm:$0xff]
    %v203 = vld [vmem:[#allocation4 + $0x180] sm:$0xff]
    %v204 = vld [vmem:[#allocation4 + $0x188] sm:$0xff]
    %v205 = vld [vmem:[#allocation4 + $0x190] sm:$0xff]
    %v206 = vld [vmem:[#allocation4 + $0x198] sm:$0xff]
    %v207 = vld [vmem:[#allocation4 + $0x1a0] sm:$0xff]
    %v208 = vld [vmem:[#allocation4 + $0x1a8] sm:$0xff]
    %v209 = vld [vmem:[#allocation4 + $0x1b0] sm:$0xff]
    %v210 = vld [vmem:[#allocation4 + $0x1b8] sm:$0xff]
    %v211 = vld [vmem:[#allocation4 + $0x1c0] sm:$0xff]
    %v212 = vld [vmem:[#allocation4 + $0x1c8] sm:$0xff]
    %v213 = vld [vmem:[#allocation4 + $0x1d0] sm:$0xff]
    %v214 = vld [vmem:[#allocation4 + $0x1d8] sm:$0xff]
    %v215 = vld [vmem:[#allocation4 + $0x1e0] sm:$0xff]
    %v216 = vld [vmem:[#allocation4 + $0x1e8] sm:$0xff]
    %v217 = vld [vmem:[#allocation4 + $0x1f0] sm:$0xff]
    %v218 = vld [vmem:[#allocation4 + $0x1f8] sm:$0xff]
    %v219 = vld [vmem:[#allocation4 + $0x200] sm:$0xff]
    %v220 = vld [vmem:[#allocation4 + $0x208] sm:$0xff]
    %v221 = vld [vmem:[#allocation4 + $0x210] sm:$0xff]
    %v222 = vld [vmem:[#allocation4 + $0x218] sm:$0xff]
    %v223 = vld [vmem:[#allocation4 + $0x220] sm:$0xff]
    %v224 = vld [vmem:[#allocation4 + $0x228] sm:$0xff]
    %v225 = vld [vmem:[#allocation4 + $0x230] sm:$0xff]
    %v226 = vld [vmem:[#allocation4 + $0x238] sm:$0xff]
    %v227 = vld [vmem:[#allocation4 + $0x240] sm:$0xff]
    %v228 = vld [vmem:[#allocation4 + $0x248] sm:$0xff]
    %v229 = vld [vmem:[#allocation4 + $0x250] sm:$0xff]
    %v230 = vld [vmem:[#allocation4 + $0x258] sm:$0xff]
    %v231 = vld [vmem:[#allocation4 + $0x260] sm:$0xff]
    %v232 = vld [vmem:[#allocation4 + $0x268] sm:$0xff]
    %v233 = vld [vmem:[#allocation4 + $0x270] sm:$0xff]
    %v234 = vld [vmem:[#allocation4 + $0x278] sm:$0xff]
    %v235 = vld [vmem:[#allocation4 + $0x280] sm:$0xff]
    %v236 = vld [vmem:[#allocation4 + $0x288] sm:$0xff]
    %v237 = vld [vmem:[#allocation4 + $0x290] sm:$0xff]
    %v238 = vld [vmem:[#allocation4 + $0x298] sm:$0xff]
    %v239 = vld [vmem:[#allocation4 + $0x2a0] sm:$0xff]
    %v240 = vld [vmem:[#allocation4 + $0x2a8] sm:$0xff]
    %v241 = vld [vmem:[#allocation4 + $0x2b0] sm:$0xff]
    %v242 = vld [vmem:[#allocation4 + $0x2b8] sm:$0xff]
    %v243 = vld [vmem:[#allocation4 + $0x2c0] sm:$0xff]
    %v244 = vld [vmem:[#allocation4 + $0x2c8] sm:$0xff]
    %v245 = vld [vmem:[#allocation4 + $0x2d0] sm:$0xff]
    %v246 = vld [vmem:[#allocation4 + $0x2d8] sm:$0xff]
    %v247 = vld [vmem:[#allocation4 + $0x2e0] sm:$0xff]
    %v248 = vld [vmem:[#allocation4 + $0x2e8] sm:$0xff]
    %v249 = vld [vmem:[#allocation4 + $0x2f0] sm:$0xff]
    %v250 = vld [vmem:[#allocation4 + $0x2f8] sm:$0xff]
    %v251 = vld [vmem:[#allocation4 + $0x300] sm:$0xff]
    %v252 = vld [vmem:[#allocation4 + $0x308] sm:$0xff]
    %v253 = vld [vmem:[#allocation4 + $0x310] sm:$0xff]
    %v254 = vld [vmem:[#allocation4 + $0x318] sm:$0xff]
    %v255 = vld [vmem:[#allocation4 + $0x320] sm:$0xff]
    %v256 = vld [vmem:[#allocation4 + $0x328] sm:$0xff]
    %v257 = vld [vmem:[#allocation4 + $0x330] sm:$0xff]
    %v258 = vld [vmem:[#allocation4 + $0x338] sm:$0xff]
    %v259 = vld [vmem:[#allocation4 + $0x340] sm:$0xff]
    %v260 = vld [vmem:[#allocation4 + $0x348] sm:$0xff]
    %v261 = vld [vmem:[#allocation4 + $0x350] sm:$0xff]
    %v262 = vld [vmem:[#allocation4 + $0x358] sm:$0xff]
    %v263 = vld [vmem:[#allocation4 + $0x360] sm:$0xff]
    %v264 = vld [vmem:[#allocation4 + $0x368] sm:$0xff]
    %v265 = vld [vmem:[#allocation4 + $0x370] sm:$0xff]
    %v266 = vld [vmem:[#allocation4 + $0x378] sm:$0xff]
    %v267 = vld [vmem:[#allocation4 + $0x380] sm:$0xff]
    %v268 = vld [vmem:[#allocation4 + $0x388] sm:$0xff]
    %v269 = vld [vmem:[#allocation4 + $0x390] sm:$0xff]
    %v270 = vld [vmem:[#allocation4 + $0x398] sm:$0xff]
    %v271 = vld [vmem:[#allocation4 + $0x3a0] sm:$0xff]
    %v272 = vld [vmem:[#allocation4 + $0x3a8] sm:$0xff]
    %v273 = vld [vmem:[#allocation4 + $0x3b0] sm:$0xff]
    %v274 = vld [vmem:[#allocation4 + $0x3b8] sm:$0xff]
    %v275 = vld [vmem:[#allocation4 + $0x3c0] sm:$0xff]
    %v276 = vld [vmem:[#allocation4 + $0x3c8] sm:$0xff]
    %v277 = vld [vmem:[#allocation4 + $0x3d0] sm:$0xff]
    %v278 = vld [vmem:[#allocation4 + $0x3d8] sm:$0xff]
    %v279 = vld [vmem:[#allocation4 + $0x3e0] sm:$0xff]
    %v280 = vld [vmem:[#allocation4 + $0x3e8] sm:$0xff]
    %v281 = vld [vmem:[#allocation4 + $0x3f0] sm:$0xff]
    %v282 = vld [vmem:[#allocation4 + $0x3f8] sm:$0xff]
    %v283 = vld [vmem:[#allocation4 + $0x400] sm:$0xff]
    %v284 = vld [vmem:[#allocation4 + $0x408] sm:$0xff]
    %v285 = vld [vmem:[#allocation4 + $0x410] sm:$0xff]
    %v286 = vld [vmem:[#allocation4 + $0x418] sm:$0xff]
    %v287 = vld [vmem:[%s2] sm:$0x3]
    %v289 = vlaneseq
    %v290 = vshrl.u32 %v289, 7
    %v291 = vsub.s32 0, %v290
    %v292 = vrot.slane %v287, %v291
    %v293 = vlaneseq
    %v294 = vshrl.u32 %v293, 7
    %v295 = vsub.s32 1, %v294
    %v296 = vrot.slane %v287, %v295
    %v431 = vunpack.c.l.b16 %v155
    %v432 = vunpack.c.h.b16 %v155
    %v433 = vunpack.c.l.b16 %v156
    %v434 = vunpack.c.h.b16 %v156
    %v435 = vunpack.c.l.b16 %v157
    %v436 = vunpack.c.h.b16 %v157
    %v437 = vunpack.c.l.b16 %v158
    %v438 = vunpack.c.h.b16 %v158
    %v439 = vunpack.c.l.b16 %v159
    %v440 = vunpack.c.h.b16 %v159
    %v441 = vunpack.c.l.b16 %v160
    %v442 = vunpack.c.h.b16 %v160
    %v443 = vunpack.c.l.b16 %v161
    %v444 = vunpack.c.h.b16 %v161
    %v445 = vunpack.c.l.b16 %v162
    %v446 = vunpack.c.h.b16 %v162
    %v447 = vunpack.c.l.b16 %v163
    %v448 = vunpack.c.h.b16 %v163
    %v449 = vunpack.c.l.b16 %v164
    %v450 = vunpack.c.h.b16 %v164
    %v451 = vunpack.c.l.b16 %v165
    %v452 = vunpack.c.h.b16 %v165
    %v453 = vunpack.c.l.b16 %v166
    %v454 = vunpack.c.h.b16 %v166
    %v455 = vunpack.c.l.b16 %v167
    %v456 = vunpack.c.h.b16 %v167
    %v457 = vunpack.c.l.b16 %v168
    %v458 = vunpack.c.h.b16 %v168
    %v459 = vunpack.c.l.b16 %v169
    %v460 = vunpack.c.h.b16 %v169
    %v461 = vunpack.c.l.b16 %v170
    %v462 = vunpack.c.h.b16 %v170
    %v463 = vunpack.c.l.b16 %v171
    %v464 = vunpack.c.h.b16 %v171
    %v465 = vunpack.c.l.b16 %v172
    %v466 = vunpack.c.h.b16 %v172
    %v467 = vunpack.c.l.b16 %v173
    %v468 = vunpack.c.h.b16 %v173
    %v469 = vunpack.c.l.b16 %v174
    %v470 = vunpack.c.h.b16 %v174
    %v471 = vunpack.c.l.b16 %v175
    %v472 = vunpack.c.h.b16 %v175
    %v473 = vunpack.c.l.b16 %v176
    %v474 = vunpack.c.h.b16 %v176
    %v475 = vunpack.c.l.b16 %v177
    %v476 = vunpack.c.h.b16 %v177
    %v477 = vunpack.c.l.b16 %v178
    %v478 = vunpack.c.h.b16 %v178
    %v479 = vunpack.c.l.b16 %v179
    %v480 = vunpack.c.h.b16 %v179
    %v481 = vunpack.c.l.b16 %v180
    %v482 = vunpack.c.h.b16 %v180
    %v483 = vunpack.c.l.b16 %v181
    %v484 = vunpack.c.h.b16 %v181
    %v485 = vunpack.c.l.b16 %v182
    %v486 = vunpack.c.h.b16 %v182
    %v487 = vunpack.c.l.b16 %v183
    %v488 = vunpack.c.h.b16 %v183
    %v489 = vunpack.c.l.b16 %v184
    %v490 = vunpack.c.h.b16 %v184
    %v491 = vunpack.c.l.b16 %v185
    %v492 = vunpack.c.h.b16 %v185
    %v493 = vunpack.c.l.b16 %v186
    %v494 = vunpack.c.h.b16 %v186
    %v495 = vunpack.c.l.b16 %v187
    %v496 = vunpack.c.h.b16 %v187
    %v497 = vunpack.c.l.b16 %v188
    %v498 = vunpack.c.h.b16 %v188
    %v499 = vunpack.c.l.b16 %v189
    %v500 = vunpack.c.h.b16 %v189
    %v501 = vunpack.c.l.b16 %v190
    %v502 = vunpack.c.h.b16 %v190
    %v503 = vunpack.c.l.b16 %v191
    %v504 = vunpack.c.h.b16 %v191
    %v505 = vunpack.c.l.b16 %v192
    %v506 = vunpack.c.h.b16 %v192
    %v507 = vunpack.c.l.b16 %v193
    %v508 = vunpack.c.h.b16 %v193
    %v509 = vunpack.c.l.b16 %v194
    %v510 = vunpack.c.h.b16 %v194
    %v511 = vunpack.c.l.b16 %v195
    %v512 = vunpack.c.h.b16 %v195
    %v513 = vunpack.c.l.b16 %v196
    %v514 = vunpack.c.h.b16 %v196
    %v515 = vunpack.c.l.b16 %v197
    %v516 = vunpack.c.h.b16 %v197
    %v517 = vunpack.c.l.b16 %v198
    %v518 = vunpack.c.h.b16 %v198
    %v519 = vunpack.c.l.b16 %v199
    %v520 = vunpack.c.h.b16 %v199
    %v521 = vunpack.c.l.b16 %v200
    %v522 = vunpack.c.h.b16 %v200
    %v523 = vunpack.c.l.b16 %v201
    %v524 = vunpack.c.h.b16 %v201
    %v525 = vunpack.c.l.b16 %v202
    %v526 = vunpack.c.h.b16 %v202
    %v527 = vunpack.c.l.b16 %v203
    %v528 = vunpack.c.h.b16 %v203
    %v529 = vunpack.c.l.b16 %v204
    %v530 = vunpack.c.h.b16 %v204
    %v531 = vunpack.c.l.b16 %v205
    %v532 = vunpack.c.h.b16 %v205
    %v533 = vunpack.c.l.b16 %v206
    %v534 = vunpack.c.h.b16 %v206
    %v535 = vunpack.c.l.b16 %v207
    %v536 = vunpack.c.h.b16 %v207
    %v537 = vunpack.c.l.b16 %v208
    %v538 = vunpack.c.h.b16 %v208
    %v539 = vunpack.c.l.b16 %v209
    %v540 = vunpack.c.h.b16 %v209
    %v541 = vunpack.c.l.b16 %v210
    %v542 = vunpack.c.h.b16 %v210
    %v543 = vunpack.c.l.b16 %v211
    %v544 = vunpack.c.h.b16 %v211
    %v545 = vunpack.c.l.b16 %v212
    %v546 = vunpack.c.h.b16 %v212
    %v547 = vunpack.c.l.b16 %v213
    %v548 = vunpack.c.h.b16 %v213
    %v549 = vunpack.c.l.b16 %v214
    %v550 = vunpack.c.h.b16 %v214
    %v551 = vunpack.c.l.b16 %v215
    %v552 = vunpack.c.h.b16 %v215
    %v553 = vunpack.c.l.b16 %v216
    %v554 = vunpack.c.h.b16 %v216
    %v555 = vunpack.c.l.b16 %v217
    %v556 = vunpack.c.h.b16 %v217
    %v557 = vunpack.c.l.b16 %v218
    %v558 = vunpack.c.h.b16 %v218
    %v559 = vunpack.c.l.b16 %v219
    %v560 = vunpack.c.h.b16 %v219
    %v561 = vunpack.c.l.b16 %v220
    %v562 = vunpack.c.h.b16 %v220
    %v563 = vunpack.c.l.b16 %v221
    %v564 = vunpack.c.h.b16 %v221
    %v565 = vunpack.c.l.b16 %v222
    %v566 = vunpack.c.h.b16 %v222
    %v567 = vunpack.c.l.b16 %v223
    %v568 = vunpack.c.h.b16 %v223
    %v569 = vunpack.c.l.b16 %v224
    %v570 = vunpack.c.h.b16 %v224
    %v571 = vunpack.c.l.b16 %v225
    %v572 = vunpack.c.h.b16 %v225
    %v573 = vunpack.c.l.b16 %v226
    %v574 = vunpack.c.h.b16 %v226
    %v575 = vunpack.c.l.b16 %v227
    %v576 = vunpack.c.h.b16 %v227
    %v577 = vunpack.c.l.b16 %v228
    %v578 = vunpack.c.h.b16 %v228
    %v579 = vunpack.c.l.b16 %v229
    %v580 = vunpack.c.h.b16 %v229
    %v581 = vunpack.c.l.b16 %v230
    %v582 = vunpack.c.h.b16 %v230
    %v583 = vunpack.c.l.b16 %v231
    %v584 = vunpack.c.h.b16 %v231
    %v585 = vunpack.c.l.b16 %v232
    %v586 = vunpack.c.h.b16 %v232
    %v587 = vunpack.c.l.b16 %v233
    %v588 = vunpack.c.h.b16 %v233
    %v589 = vunpack.c.l.b16 %v234
    %v590 = vunpack.c.h.b16 %v234
    %v591 = vunpack.c.l.b16 %v235
    %v592 = vunpack.c.h.b16 %v235
    %v593 = vunpack.c.l.b16 %v236
    %v594 = vunpack.c.h.b16 %v236
    %v595 = vunpack.c.l.b16 %v237
    %v596 = vunpack.c.h.b16 %v237
    %v597 = vunpack.c.l.b16 %v238
    %v598 = vunpack.c.h.b16 %v238
    %v599 = vunpack.c.l.b16 %v239
    %v600 = vunpack.c.h.b16 %v239
    %v601 = vunpack.c.l.b16 %v240
    %v602 = vunpack.c.h.b16 %v240
    %v603 = vunpack.c.l.b16 %v241
    %v604 = vunpack.c.h.b16 %v241
    %v605 = vunpack.c.l.b16 %v242
    %v606 = vunpack.c.h.b16 %v242
    %v607 = vunpack.c.l.b16 %v243
    %v608 = vunpack.c.h.b16 %v243
    %v609 = vunpack.c.l.b16 %v244
    %v610 = vunpack.c.h.b16 %v244
    %v611 = vunpack.c.l.b16 %v245
    %v612 = vunpack.c.h.b16 %v245
    %v613 = vunpack.c.l.b16 %v246
    %v614 = vunpack.c.h.b16 %v246
    %v615 = vunpack.c.l.b16 %v247
    %v616 = vunpack.c.h.b16 %v247
    %v617 = vunpack.c.l.b16 %v248
    %v618 = vunpack.c.h.b16 %v248
    %v619 = vunpack.c.l.b16 %v249
    %v620 = vunpack.c.h.b16 %v249
    %v621 = vunpack.c.l.b16 %v250
    %v622 = vunpack.c.h.b16 %v250
    %v623 = vunpack.c.l.b16 %v251
    %v624 = vunpack.c.h.b16 %v251
    %v625 = vunpack.c.l.b16 %v252
    %v626 = vunpack.c.h.b16 %v252
    %v627 = vunpack.c.l.b16 %v253
    %v628 = vunpack.c.h.b16 %v253
    %v629 = vunpack.c.l.b16 %v254
    %v630 = vunpack.c.h.b16 %v254
    %v631 = vunpack.c.l.b16 %v255
    %v632 = vunpack.c.h.b16 %v255
    %v633 = vunpack.c.l.b16 %v256
    %v634 = vunpack.c.h.b16 %v256
    %v635 = vunpack.c.l.b16 %v257
    %v636 = vunpack.c.h.b16 %v257
    %v637 = vunpack.c.l.b16 %v258
    %v638 = vunpack.c.h.b16 %v258
    %v639 = vunpack.c.l.b16 %v259
    %v640 = vunpack.c.h.b16 %v259
    %v641 = vunpack.c.l.b16 %v260
    %v642 = vunpack.c.h.b16 %v260
    %v643 = vunpack.c.l.b16 %v261
    %v644 = vunpack.c.h.b16 %v261
    %v645 = vunpack.c.l.b16 %v262
    %v646 = vunpack.c.h.b16 %v262
    %v647 = vunpack.c.l.b16 %v263
    %v648 = vunpack.c.h.b16 %v263
    %v649 = vunpack.c.l.b16 %v264
    %v650 = vunpack.c.h.b16 %v264
    %v651 = vunpack.c.l.b16 %v265
    %v652 = vunpack.c.h.b16 %v265
    %v653 = vunpack.c.l.b16 %v266
    %v654 = vunpack.c.h.b16 %v266
    %v655 = vunpack.c.l.b16 %v267
    %v656 = vunpack.c.h.b16 %v267
    %v657 = vunpack.c.l.b16 %v268
    %v658 = vunpack.c.h.b16 %v268
    %v659 = vunpack.c.l.b16 %v269
    %v660 = vunpack.c.h.b16 %v269
    %v661 = vunpack.c.l.b16 %v270
    %v662 = vunpack.c.h.b16 %v270
    %v663 = vunpack.c.l.b16 %v271
    %v664 = vunpack.c.h.b16 %v271
    %v665 = vunpack.c.l.b16 %v272
    %v666 = vunpack.c.h.b16 %v272
    %v667 = vunpack.c.l.b16 %v273
    %v668 = vunpack.c.h.b16 %v273
    %v669 = vunpack.c.l.b16 %v274
    %v670 = vunpack.c.h.b16 %v274
    %v671 = vunpack.c.l.b16 %v275
    %v672 = vunpack.c.h.b16 %v275
    %v673 = vunpack.c.l.b16 %v276
    %v674 = vunpack.c.h.b16 %v276
    %v675 = vunpack.c.l.b16 %v277
    %v676 = vunpack.c.h.b16 %v277
    %v677 = vunpack.c.l.b16 %v278
    %v678 = vunpack.c.h.b16 %v278
    %v679 = vunpack.c.l.b16 %v279
    %v680 = vunpack.c.h.b16 %v279
    %v681 = vunpack.c.l.b16 %v280
    %v682 = vunpack.c.h.b16 %v280
    %v683 = vunpack.c.l.b16 %v281
    %v684 = vunpack.c.h.b16 %v281
    %v685 = vunpack.c.l.b16 %v282
    %v686 = vunpack.c.h.b16 %v282
    %v687 = vunpack.c.l.b16 %v283
    %v688 = vunpack.c.h.b16 %v283
    %v689 = vunpack.c.l.b16 %v284
    %v690 = vunpack.c.h.b16 %v284
    %v691 = vunpack.c.l.b16 %v285
    %v692 = vunpack.c.h.b16 %v285
    %v693 = vunpack.c.l.b16 %v286
    %v694 = vunpack.c.h.b16 %v286
    %v695 = vpack.c.b16 %v433, %v431
    %v696 = vpack.c.b16 %v434, %v432
    %v697 = vpack.c.b16 %v437, %v435
    %v698 = vpack.c.b16 %v438, %v436
    %v699 = vpack.c.b16 %v441, %v439
    %v700 = vpack.c.b16 %v442, %v440
    %v701 = vpack.c.b16 %v445, %v443
    %v702 = vpack.c.b16 %v446, %v444
    %v703 = vpack.c.b16 %v449, %v447
    %v704 = vpack.c.b16 %v450, %v448
    %v705 = vpack.c.b16 %v453, %v451
    %v706 = vpack.c.b16 %v454, %v452
    %v707 = vpack.c.b16 %v457, %v455
    %v708 = vpack.c.b16 %v458, %v456
    %v709 = vpack.c.b16 %v461, %v459
    %v710 = vpack.c.b16 %v462, %v460
    %v711 = vpack.c.b16 %v465, %v463
    %v712 = vpack.c.b16 %v466, %v464
    %v713 = vpack.c.b16 %v469, %v467
    %v714 = vpack.c.b16 %v470, %v468
    %v715 = vpack.c.b16 %v473, %v471
    %v716 = vpack.c.b16 %v474, %v472
    %v717 = vpack.c.b16 %v477, %v475
    %v718 = vpack.c.b16 %v478, %v476
    %v719 = vpack.c.b16 %v481, %v479
    %v720 = vpack.c.b16 %v482, %v480
    %v721 = vpack.c.b16 %v485, %v483
    %v722 = vpack.c.b16 %v486, %v484
    %v723 = vpack.c.b16 %v489, %v487
    %v724 = vpack.c.b16 %v490, %v488
    %v725 = vpack.c.b16 %v493, %v491
    %v726 = vpack.c.b16 %v494, %v492
    %v727 = vpack.c.b16 %v497, %v495
    %v728 = vpack.c.b16 %v498, %v496
    %v729 = vpack.c.b16 %v501, %v499
    %v730 = vpack.c.b16 %v502, %v500
    %v731 = vpack.c.b16 %v505, %v503
    %v732 = vpack.c.b16 %v506, %v504
    %v733 = vpack.c.b16 %v509, %v507
    %v734 = vpack.c.b16 %v510, %v508
    %v735 = vpack.c.b16 %v513, %v511
    %v736 = vpack.c.b16 %v514, %v512
    %v737 = vpack.c.b16 %v517, %v515
    %v738 = vpack.c.b16 %v518, %v516
    %v739 = vpack.c.b16 %v521, %v519
    %v740 = vpack.c.b16 %v522, %v520
    %v741 = vpack.c.b16 %v525, %v523
    %v742 = vpack.c.b16 %v526, %v524
    %v743 = vpack.c.b16 %v529, %v527
    %v744 = vpack.c.b16 %v530, %v528
    %v745 = vpack.c.b16 %v533, %v531
    %v746 = vpack.c.b16 %v534, %v532
    %v747 = vpack.c.b16 %v537, %v535
    %v748 = vpack.c.b16 %v538, %v536
    %v749 = vpack.c.b16 %v541, %v539
    %v750 = vpack.c.b16 %v542, %v540
    %v751 = vpack.c.b16 %v545, %v543
    %v752 = vpack.c.b16 %v546, %v544
    %v753 = vpack.c.b16 %v549, %v547
    %v754 = vpack.c.b16 %v550, %v548
    %v755 = vpack.c.b16 %v553, %v551
    %v756 = vpack.c.b16 %v554, %v552
    %v757 = vpack.c.b16 %v557, %v555
    %v758 = vpack.c.b16 %v558, %v556
    %v759 = vpack.c.b16 %v561, %v559
    %v760 = vpack.c.b16 %v562, %v560
    %v761 = vpack.c.b16 %v565, %v563
    %v762 = vpack.c.b16 %v566, %v564
    %v763 = vpack.c.b16 %v569, %v567
    %v764 = vpack.c.b16 %v570, %v568
    %v765 = vpack.c.b16 %v573, %v571
    %v766 = vpack.c.b16 %v574, %v572
    %v767 = vpack.c.b16 %v577, %v575
    %v768 = vpack.c.b16 %v578, %v576
    %v769 = vpack.c.b16 %v581, %v579
    %v770 = vpack.c.b16 %v582, %v580
    %v771 = vpack.c.b16 %v585, %v583
    %v772 = vpack.c.b16 %v586, %v584
    %v773 = vpack.c.b16 %v589, %v587
    %v774 = vpack.c.b16 %v590, %v588
    %v775 = vpack.c.b16 %v593, %v591
    %v776 = vpack.c.b16 %v594, %v592
    %v777 = vpack.c.b16 %v597, %v595
    %v778 = vpack.c.b16 %v598, %v596
    %v779 = vpack.c.b16 %v601, %v599
    %v780 = vpack.c.b16 %v602, %v600
    %v781 = vpack.c.b16 %v605, %v603
    %v782 = vpack.c.b16 %v606, %v604
    %v783 = vpack.c.b16 %v609, %v607
    %v784 = vpack.c.b16 %v610, %v608
    %v785 = vpack.c.b16 %v613, %v611
    %v786 = vpack.c.b16 %v614, %v612
    %v787 = vpack.c.b16 %v617, %v615
    %v788 = vpack.c.b16 %v618, %v616
    %v789 = vpack.c.b16 %v621, %v619
    %v790 = vpack.c.b16 %v622, %v620
    %v791 = vpack.c.b16 %v625, %v623
    %v792 = vpack.c.b16 %v626, %v624
    %v793 = vpack.c.b16 %v629, %v627
    %v794 = vpack.c.b16 %v630, %v628
    %v795 = vpack.c.b16 %v633, %v631
    %v796 = vpack.c.b16 %v634, %v632
    %v797 = vpack.c.b16 %v637, %v635
    %v798 = vpack.c.b16 %v638, %v636
    %v799 = vpack.c.b16 %v641, %v639
    %v800 = vpack.c.b16 %v642, %v640
    %v801 = vpack.c.b16 %v645, %v643
    %v802 = vpack.c.b16 %v646, %v644
    %v803 = vpack.c.b16 %v649, %v647
    %v804 = vpack.c.b16 %v650, %v648
    %v805 = vpack.c.b16 %v653, %v651
    %v806 = vpack.c.b16 %v654, %v652
    %v807 = vpack.c.b16 %v657, %v655
    %v808 = vpack.c.b16 %v658, %v656
    %v809 = vpack.c.b16 %v661, %v659
    %v810 = vpack.c.b16 %v662, %v660
    %v811 = vpack.c.b16 %v665, %v663
    %v812 = vpack.c.b16 %v666, %v664
    %v813 = vpack.c.b16 %v669, %v667
    %v814 = vpack.c.b16 %v670, %v668
    %v815 = vpack.c.b16 %v673, %v671
    %v816 = vpack.c.b16 %v674, %v672
    %v817 = vpack.c.b16 %v677, %v675
    %v818 = vpack.c.b16 %v678, %v676
    %v819 = vpack.c.b16 %v681, %v679
    %v820 = vpack.c.b16 %v682, %v680
    %v821 = vpack.c.b16 %v685, %v683
    %v822 = vpack.c.b16 %v686, %v684
    %v823 = vpack.c.b16 %v689, %v687
    %v824 = vpack.c.b16 %v690, %v688
    %v825 = vpack.c.b16 %v693, %v691
    %v826 = vpack.c.b16 %v694, %v692
    %vm959 = vcmask 261120
    %v961 = vsel %vm959, %v154, 0
    %963 = vmatprep.subr.bf16.mxu0 %v710
    %964 = vmatpush1.bf16.msra.mxu0 %v709
    %965 = vmatprep.subr.bf16.mxu0 %v708
    %966 = vmatpush1.bf16.msra.mxu0 %v707
    %967 = vmatprep.subr.bf16.mxu0 %v706
    %968 = vmatpush1.bf16.msra.mxu0 %v705
    %969 = vmatprep.subr.bf16.mxu0 %v704
    %970 = vmatpush1.bf16.msra.mxu0 %v703
    %971 = vmatprep.subr.bf16.mxu0 %v702
    %972 = vmatpush1.bf16.msra.mxu0 %v701
    %973 = vmatprep.subr.bf16.mxu0 %v700
    %974 = vmatpush1.bf16.msra.mxu0 %v699
    %975 = vmatprep.subr.bf16.mxu0 %v698
    %976 = vmatpush1.bf16.msra.mxu0 %v697
    %977 = vmatprep.subr.bf16.mxu0 %v696
    %978 = vmatpush1.bf16.msra.mxu0 %v695
    %979 = vmatprep.subr.bf16.mxu0 %v726
    %980 = vmatpush2.bf16.msra.mxu0 %v725
    %981 = vmatprep.subr.bf16.mxu0 %v724
    %982 = vmatpush2.bf16.msra.mxu0 %v723
    %983 = vmatprep.subr.bf16.mxu0 %v722
    %984 = vmatpush2.bf16.msra.mxu0 %v721
    %985 = vmatprep.subr.bf16.mxu0 %v720
    %986 = vmatpush2.bf16.msra.mxu0 %v719
    %987 = vmatprep.subr.bf16.mxu0 %v718
    %988 = vmatpush2.bf16.msra.mxu0 %v717
    %989 = vmatprep.subr.bf16.mxu0 %v716
    %990 = vmatpush2.bf16.msra.mxu0 %v715
    %991 = vmatprep.subr.bf16.mxu0 %v714
    %992 = vmatpush2.bf16.msra.mxu0 %v713
    %993 = vmatprep.subr.bf16.mxu0 %v712
    %994 = vmatpush2.bf16.msra.mxu0 %v711
    %995 = vmatprep.mubr.bf16.mxu0 %v147
    %996 = vmatmul.mubr.bf16.gmra.mxu0 %v146
    %v997 = vpop.f32.mrf.mxu0
    %v998 = vadd.f32 %v292, %v997
    %v999 = vpop.f32.mrf.mxu0
    %v1000 = vadd.f32 %v296, %v999
    %v1001 = vpop.f32.mrf.mxu0
    %v1002 = vadd.f32 %v292, %v1001
    %v1003 = vpop.f32.mrf.mxu0
    %v1004 = vadd.f32 %v296, %v1003
    %1005 = vdwg.mxu0
    %1006 = vmatprep.subr.bf16.mxu0 %v742
    %1007 = vmatpush1.bf16.msra.mxu0 %v741
    %1008 = vmatprep.subr.bf16.mxu0 %v740
    %1009 = vmatpush1.bf16.msra.mxu0 %v739
    %1010 = vmatprep.subr.bf16.mxu0 %v738
    %1011 = vmatpush1.bf16.msra.mxu0 %v737
    %1012 = vmatprep.subr.bf16.mxu0 %v736
    %1013 = vmatpush1.bf16.msra.mxu0 %v735
    %1014 = vmatprep.subr.bf16.mxu0 %v734
    %1015 = vmatpush1.bf16.msra.mxu0 %v733
    %1016 = vmatprep.subr.bf16.mxu0 %v732
    %1017 = vmatpush1.bf16.msra.mxu0 %v731
    %1018 = vmatprep.subr.bf16.mxu0 %v730
    %1019 = vmatpush1.bf16.msra.mxu0 %v729
    %1020 = vmatprep.subr.bf16.mxu0 %v728
    %1021 = vmatpush1.bf16.msra.mxu0 %v727
    %1022 = vmatprep.subr.bf16.mxu0 %v758
    %1023 = vmatpush2.bf16.msra.mxu0 %v757
    %1024 = vmatprep.subr.bf16.mxu0 %v756
    %1025 = vmatpush2.bf16.msra.mxu0 %v755
    %1026 = vmatprep.subr.bf16.mxu0 %v754
    %1027 = vmatpush2.bf16.msra.mxu0 %v753
    %1028 = vmatprep.subr.bf16.mxu0 %v752
    %1029 = vmatpush2.bf16.msra.mxu0 %v751
    %1030 = vmatprep.subr.bf16.mxu0 %v750
    %1031 = vmatpush2.bf16.msra.mxu0 %v749
    %1032 = vmatprep.subr.bf16.mxu0 %v748
    %1033 = vmatpush2.bf16.msra.mxu0 %v747
    %1034 = vmatprep.subr.bf16.mxu0 %v746
    %1035 = vmatpush2.bf16.msra.mxu0 %v745
    %1036 = vmatprep.subr.bf16.mxu0 %v744
    %1037 = vmatpush2.bf16.msra.mxu0 %v743
    %1038 = vmatprep.mubr.bf16.mxu0 %v149
    %1039 = vmatmul.mubr.bf16.gmra.mxu0 %v148
    %v1040 = vpop.f32.mrf.mxu0
    %v1041 = vadd.f32 %v998, %v1040
    %v1042 = vpop.f32.mrf.mxu0
    %v1043 = vadd.f32 %v1000, %v1042
    %v1044 = vpop.f32.mrf.mxu0
    %v1045 = vadd.f32 %v1002, %v1044
    %v1046 = vpop.f32.mrf.mxu0
    %v1047 = vadd.f32 %v1004, %v1046
    %1048 = vdwg.mxu0
    %1049 = vmatprep.subr.bf16.mxu0 %v774
    %1050 = vmatpush1.bf16.msra.mxu0 %v773
    %1051 = vmatprep.subr.bf16.mxu0 %v772
    %1052 = vmatpush1.bf16.msra.mxu0 %v771
    %1053 = vmatprep.subr.bf16.mxu0 %v770
    %1054 = vmatpush1.bf16.msra.mxu0 %v769
    %1055 = vmatprep.subr.bf16.mxu0 %v768
    %1056 = vmatpush1.bf16.msra.mxu0 %v767
    %1057 = vmatprep.subr.bf16.mxu0 %v766
    %1058 = vmatpush1.bf16.msra.mxu0 %v765
    %1059 = vmatprep.subr.bf16.mxu0 %v764
    %1060 = vmatpush1.bf16.msra.mxu0 %v763
    %1061 = vmatprep.subr.bf16.mxu0 %v762
    %1062 = vmatpush1.bf16.msra.mxu0 %v761
    %1063 = vmatprep.subr.bf16.mxu0 %v760
    %1064 = vmatpush1.bf16.msra.mxu0 %v759
    %1065 = vmatprep.subr.bf16.mxu0 %v790
    %1066 = vmatpush2.bf16.msra.mxu0 %v789
    %1067 = vmatprep.subr.bf16.mxu0 %v788
    %1068 = vmatpush2.bf16.msra.mxu0 %v787
    %1069 = vmatprep.subr.bf16.mxu0 %v786
    %1070 = vmatpush2.bf16.msra.mxu0 %v785
    %1071 = vmatprep.subr.bf16.mxu0 %v784
    %1072 = vmatpush2.bf16.msra.mxu0 %v783
    %1073 = vmatprep.subr.bf16.mxu0 %v782
    %1074 = vmatpush2.bf16.msra.mxu0 %v781
    %1075 = vmatprep.subr.bf16.mxu0 %v780
    %1076 = vmatpush2.bf16.msra.mxu0 %v779
    %1077 = vmatprep.subr.bf16.mxu0 %v778
    %1078 = vmatpush2.bf16.msra.mxu0 %v777
    %1079 = vmatprep.subr.bf16.mxu0 %v776
    %1080 = vmatpush2.bf16.msra.mxu0 %v775
    %1081 = vmatprep.mubr.bf16.mxu0 %v151
    %1082 = vmatmul.mubr.bf16.gmra.mxu0 %v150
    %v1083 = vpop.f32.mrf.mxu0
    %v1084 = vadd.f32 %v1041, %v1083
    %v1085 = vpop.f32.mrf.mxu0
    %v1086 = vadd.f32 %v1043, %v1085
    %v1087 = vpop.f32.mrf.mxu0
    %v1088 = vadd.f32 %v1045, %v1087
    %v1089 = vpop.f32.mrf.mxu0
    %v1090 = vadd.f32 %v1047, %v1089
    %1091 = vdwg.mxu0
    %1092 = vmatprep.subr.bf16.mxu0 %v806
    %1093 = vmatpush1.bf16.msra.mxu0 %v805
    %1094 = vmatprep.subr.bf16.mxu0 %v804
    %1095 = vmatpush1.bf16.msra.mxu0 %v803
    %1096 = vmatprep.subr.bf16.mxu0 %v802
    %1097 = vmatpush1.bf16.msra.mxu0 %v801
    %1098 = vmatprep.subr.bf16.mxu0 %v800
    %1099 = vmatpush1.bf16.msra.mxu0 %v799
    %1100 = vmatprep.subr.bf16.mxu0 %v798
    %1101 = vmatpush1.bf16.msra.mxu0 %v797
    %1102 = vmatprep.subr.bf16.mxu0 %v796
    %1103 = vmatpush1.bf16.msra.mxu0 %v795
    %1104 = vmatprep.subr.bf16.mxu0 %v794
    %1105 = vmatpush1.bf16.msra.mxu0 %v793
    %1106 = vmatprep.subr.bf16.mxu0 %v792
    %1107 = vmatpush1.bf16.msra.mxu0 %v791
    %1108 = vmatprep.subr.bf16.mxu0 %v822
    %1109 = vmatpush2.bf16.msra.mxu0 %v821
    %1110 = vmatprep.subr.bf16.mxu0 %v820
    %1111 = vmatpush2.bf16.msra.mxu0 %v819
    %1112 = vmatprep.subr.bf16.mxu0 %v818
    %1113 = vmatpush2.bf16.msra.mxu0 %v817
    %1114 = vmatprep.subr.bf16.mxu0 %v816
    %1115 = vmatpush2.bf16.msra.mxu0 %v815
    %1116 = vmatprep.subr.bf16.mxu0 %v814
    %1117 = vmatpush2.bf16.msra.mxu0 %v813
    %1118 = vmatprep.subr.bf16.mxu0 %v812
    %1119 = vmatpush2.bf16.msra.mxu0 %v811
    %1120 = vmatprep.subr.bf16.mxu0 %v810
    %1121 = vmatpush2.bf16.msra.mxu0 %v809
    %1122 = vmatprep.subr.bf16.mxu0 %v808
    %1123 = vmatpush2.bf16.msra.mxu0 %v807
    %1124 = vmatprep.mubr.bf16.mxu0 %v153
    %1125 = vmatmul.mubr.bf16.gmra.mxu0 %v152
    %v1126 = vpop.f32.mrf.mxu0
    %v1127 = vadd.f32 %v1084, %v1126
    %v1128 = vpop.f32.mrf.mxu0
    %v1129 = vadd.f32 %v1086, %v1128
    %v1130 = vpop.f32.mrf.mxu0
    %v1131 = vadd.f32 %v1088, %v1130
    %v1132 = vpop.f32.mrf.mxu0
    %v1133 = vadd.f32 %v1090, %v1132
    %1134 = vdwg.mxu0
    %1135 = vmatprep.subr.bf16.mxu0 0
    %1136 = vmatpush1.bf16.msra.mxu0 0
    %1137 = vmatprep.subr.bf16.mxu0 0
    %1138 = vmatpush1.bf16.msra.mxu0 0
    %1139 = vmatprep.subr.bf16.mxu0 0
    %1140 = vmatpush1.bf16.msra.mxu0 0
    %1141 = vmatprep.subr.bf16.mxu0 0
    %1142 = vmatpush1.bf16.msra.mxu0 0
    %1143 = vmatprep.subr.bf16.mxu0 0
    %1144 = vmatpush1.bf16.msra.mxu0 0
    %1145 = vmatprep.subr.bf16.mxu0 0
    %1146 = vmatpush1.bf16.msra.mxu0 0
    %1147 = vmatprep.subr.bf16.mxu0 %v826
    %1148 = vmatpush1.bf16.msra.mxu0 %v825
    %1149 = vmatprep.subr.bf16.mxu0 %v824
    %1150 = vmatpush1.bf16.msra.mxu0 %v823
    %1151 = vmatprep.subr.bf16.mxu0 0
    %1152 = vmatpush2.bf16.msra.mxu0 0
    %1153 = vmatprep.subr.bf16.mxu0 0
    %1154 = vmatpush2.bf16.msra.mxu0 0
    %1155 = vmatprep.subr.bf16.mxu0 0
    %1156 = vmatpush2.bf16.msra.mxu0 0
    %1157 = vmatprep.subr.bf16.mxu0 0
    %1158 = vmatpush2.bf16.msra.mxu0 0
    %1159 = vmatprep.subr.bf16.mxu0 0
    %1160 = vmatpush2.bf16.msra.mxu0 0
    %1161 = vmatprep.subr.bf16.mxu0 0
    %1162 = vmatpush2.bf16.msra.mxu0 0
    %1163 = vmatprep.subr.bf16.mxu0 0
    %1164 = vmatpush2.bf16.msra.mxu0 0
    %1165 = vmatprep.subr.bf16.mxu0 0
    %1166 = vmatpush2.bf16.msra.mxu0 0
    %1167 = vmatprep.mubr.bf16.mxu0 0
    %1168 = vmatmul.mubr.bf16.gmra.mxu0 %v961
    %v1169 = vpop.f32.mrf.mxu0
    %v1170 = vadd.f32 %v1127, %v1169
    %v1171 = vpop.f32.mrf.mxu0
    %v1172 = vadd.f32 %v1129, %v1171
    %v1173 = vpop.f32.mrf.mxu0
    %v1174 = vadd.f32 %v1131, %v1173
    %v1175 = vpop.f32.mrf.mxu0
    %v1176 = vadd.f32 %v1133, %v1175
    %1177 = vdwg.mxu0
    %v1178 = vtanh.pop %v1170
    %v1179 = vtanh.pop %v1172
    %v1180 = vtanh.pop %v1174
    %v1181 = vtanh.pop %v1176
    %v1182 = vld [vmem:[#allocation6] sm:$0xff]
    %v1183 = vld [vmem:[#allocation6 + $0x8] sm:$0xff]
    %v1184 = vld [vmem:[#allocation6 + $0x10] sm:$0xff]
    %v1185 = vld [vmem:[#allocation6 + $0x18] sm:$0xff]
    %v1186 = vld [vmem:[#allocation6 + $0x20] sm:$0xff]
    %v1187 = vld [vmem:[#allocation6 + $0x28] sm:$0xff]
    %v1188 = vld [vmem:[#allocation6 + $0x30] sm:$0xff]
    %v1189 = vld [vmem:[#allocation6 + $0x38] sm:$0xff]
    %v1190 = vld [vmem:[#allocation6 + $0x40] sm:$0xff]
    %v1191 = vld [vmem:[#allocation6 + $0x48] sm:$0xff]
    %v1192 = vld [vmem:[#allocation6 + $0x50] sm:$0xff]
    %v1193 = vld [vmem:[#allocation6 + $0x58] sm:$0xff]
    %v1194 = vld [vmem:[#allocation6 + $0x60] sm:$0xff]
    %v1195 = vld [vmem:[#allocation6 + $0x68] sm:$0xff]
    %v1196 = vld [vmem:[#allocation6 + $0x70] sm:$0xff]
    %v1197 = vld [vmem:[#allocation6 + $0x78] sm:$0xff]
    %v1198 = vld [vmem:[#allocation6 + $0x80] sm:$0xff]
    %v1199 = vld [vmem:[#allocation6 + $0x88] sm:$0xff]
    %v1200 = vld [vmem:[#allocation6 + $0x90] sm:$0xff]
    %v1201 = vld [vmem:[#allocation6 + $0x98] sm:$0xff]
    %v1202 = vld [vmem:[#allocation6 + $0xa0] sm:$0xff]
    %v1203 = vld [vmem:[#allocation6 + $0xa8] sm:$0xff]
    %v1204 = vld [vmem:[#allocation6 + $0xb0] sm:$0xff]
    %v1205 = vld [vmem:[#allocation6 + $0xb8] sm:$0xff]
    %v1206 = vld [vmem:[#allocation6 + $0xc0] sm:$0xff]
    %v1207 = vld [vmem:[#allocation6 + $0xc8] sm:$0xff]
    %v1208 = vld [vmem:[#allocation6 + $0xd0] sm:$0xff]
    %v1209 = vld [vmem:[#allocation6 + $0xd8] sm:$0xff]
    %v1210 = vld [vmem:[#allocation6 + $0xe0] sm:$0xff]
    %v1211 = vld [vmem:[#allocation6 + $0xe8] sm:$0xff]
    %v1212 = vld [vmem:[#allocation6 + $0xf0] sm:$0xff]
    %v1213 = vld [vmem:[#allocation6 + $0xf8] sm:$0xff]
    %v1214 = vld [vmem:[#allocation6 + $0x100] sm:$0xff]
    %v1215 = vld [vmem:[#allocation6 + $0x108] sm:$0xff]
    %v1216 = vld [vmem:[#allocation6 + $0x110] sm:$0xff]
    %v1217 = vld [vmem:[#allocation6 + $0x118] sm:$0xff]
    %v1218 = vld [vmem:[#allocation6 + $0x120] sm:$0xff]
    %v1219 = vld [vmem:[#allocation6 + $0x128] sm:$0xff]
    %v1220 = vld [vmem:[#allocation6 + $0x130] sm:$0xff]
    %v1221 = vld [vmem:[#allocation6 + $0x138] sm:$0xff]
    %v1222 = vld [vmem:[#allocation6 + $0x140] sm:$0xff]
    %v1223 = vld [vmem:[#allocation6 + $0x148] sm:$0xff]
    %v1224 = vld [vmem:[#allocation6 + $0x150] sm:$0xff]
    %v1225 = vld [vmem:[#allocation6 + $0x158] sm:$0xff]
    %v1226 = vld [vmem:[#allocation6 + $0x160] sm:$0xff]
    %v1227 = vld [vmem:[#allocation6 + $0x168] sm:$0xff]
    %v1228 = vld [vmem:[#allocation6 + $0x170] sm:$0xff]
    %v1229 = vld [vmem:[#allocation6 + $0x178] sm:$0xff]
    %v1230 = vld [vmem:[#allocation6 + $0x180] sm:$0xff]
    %v1231 = vld [vmem:[#allocation6 + $0x188] sm:$0xff]
    %v1232 = vld [vmem:[#allocation6 + $0x190] sm:$0xff]
    %v1233 = vld [vmem:[#allocation6 + $0x198] sm:$0xff]
    %v1234 = vld [vmem:[#allocation6 + $0x1a0] sm:$0xff]
    %v1235 = vld [vmem:[#allocation6 + $0x1a8] sm:$0xff]
    %v1236 = vld [vmem:[#allocation6 + $0x1b0] sm:$0xff]
    %v1237 = vld [vmem:[#allocation6 + $0x1b8] sm:$0xff]
    %v1238 = vld [vmem:[#allocation6 + $0x1c0] sm:$0xff]
    %v1239 = vld [vmem:[#allocation6 + $0x1c8] sm:$0xff]
    %v1240 = vld [vmem:[#allocation6 + $0x1d0] sm:$0xff]
    %v1241 = vld [vmem:[#allocation6 + $0x1d8] sm:$0xff]
    %v1242 = vld [vmem:[#allocation6 + $0x1e0] sm:$0xff]
    %v1243 = vld [vmem:[#allocation6 + $0x1e8] sm:$0xff]
    %v1244 = vld [vmem:[#allocation6 + $0x1f0] sm:$0xff]
    %v1245 = vld [vmem:[#allocation6 + $0x1f8] sm:$0xff]
    %v1246 = vld [vmem:[#allocation6 + $0x200] sm:$0xff]
    %v1247 = vld [vmem:[#allocation6 + $0x208] sm:$0xff]
    %v1248 = vld [vmem:[#allocation6 + $0x210] sm:$0xff]
    %v1249 = vld [vmem:[#allocation6 + $0x218] sm:$0xff]
    %v1250 = vld [vmem:[#allocation6 + $0x220] sm:$0xff]
    %v1251 = vld [vmem:[#allocation6 + $0x228] sm:$0xff]
    %v1252 = vld [vmem:[#allocation6 + $0x230] sm:$0xff]
    %v1253 = vld [vmem:[#allocation6 + $0x238] sm:$0xff]
    %v1254 = vld [vmem:[#allocation6 + $0x240] sm:$0xff]
    %v1255 = vld [vmem:[#allocation6 + $0x248] sm:$0xff]
    %v1256 = vld [vmem:[#allocation6 + $0x250] sm:$0xff]
    %v1257 = vld [vmem:[#allocation6 + $0x258] sm:$0xff]
    %v1258 = vld [vmem:[#allocation6 + $0x260] sm:$0xff]
    %v1259 = vld [vmem:[#allocation6 + $0x268] sm:$0xff]
    %v1260 = vld [vmem:[#allocation6 + $0x270] sm:$0xff]
    %v1261 = vld [vmem:[#allocation6 + $0x278] sm:$0xff]
    %v1262 = vld [vmem:[#allocation6 + $0x280] sm:$0xff]
    %v1263 = vld [vmem:[#allocation6 + $0x288] sm:$0xff]
    %v1264 = vld [vmem:[#allocation6 + $0x290] sm:$0xff]
    %v1265 = vld [vmem:[#allocation6 + $0x298] sm:$0xff]
    %v1266 = vld [vmem:[#allocation6 + $0x2a0] sm:$0xff]
    %v1267 = vld [vmem:[#allocation6 + $0x2a8] sm:$0xff]
    %v1268 = vld [vmem:[#allocation6 + $0x2b0] sm:$0xff]
    %v1269 = vld [vmem:[#allocation6 + $0x2b8] sm:$0xff]
    %v1270 = vld [vmem:[#allocation6 + $0x2c0] sm:$0xff]
    %v1271 = vld [vmem:[#allocation6 + $0x2c8] sm:$0xff]
    %v1272 = vld [vmem:[#allocation6 + $0x2d0] sm:$0xff]
    %v1273 = vld [vmem:[#allocation6 + $0x2d8] sm:$0xff]
    %v1274 = vld [vmem:[#allocation6 + $0x2e0] sm:$0xff]
    %v1275 = vld [vmem:[#allocation6 + $0x2e8] sm:$0xff]
    %v1276 = vld [vmem:[#allocation6 + $0x2f0] sm:$0xff]
    %v1277 = vld [vmem:[#allocation6 + $0x2f8] sm:$0xff]
    %v1278 = vld [vmem:[#allocation7] sm:$0xff]
    %v1279 = vld [vmem:[#allocation7 + $0x8] sm:$0xff]
    %v1280 = vld [vmem:[#allocation7 + $0x10] sm:$0xff]
    %v1281 = vld [vmem:[#allocation7 + $0x18] sm:$0xff]
    %v1282 = vld [vmem:[#allocation7 + $0x20] sm:$0xff]
    %v1283 = vld [vmem:[#allocation7 + $0x28] sm:$0xff]
    %v1284 = vld [vmem:[#allocation7 + $0x30] sm:$0xff]
    %v1285 = vld [vmem:[#allocation7 + $0x38] sm:$0xff]
    %v1286 = vld [vmem:[#allocation7 + $0x40] sm:$0xff]
    %v1287 = vld [vmem:[#allocation7 + $0x48] sm:$0xff]
    %v1288 = vld [vmem:[#allocation7 + $0x50] sm:$0xff]
    %v1289 = vld [vmem:[#allocation7 + $0x58] sm:$0xff]
    %v1290 = vld [vmem:[#allocation7 + $0x60] sm:$0xff]
    %v1291 = vld [vmem:[#allocation7 + $0x68] sm:$0xff]
    %v1292 = vld [vmem:[#allocation7 + $0x70] sm:$0xff]
    %v1293 = vld [vmem:[#allocation7 + $0x78] sm:$0xff]
    %v1294 = vld [vmem:[#allocation7 + $0x80] sm:$0xff]
    %v1295 = vld [vmem:[#allocation7 + $0x88] sm:$0xff]
    %v1296 = vld [vmem:[#allocation7 + $0x90] sm:$0xff]
    %v1297 = vld [vmem:[#allocation7 + $0x98] sm:$0xff]
    %v1298 = vld [vmem:[#allocation7 + $0xa0] sm:$0xff]
    %v1299 = vld [vmem:[#allocation7 + $0xa8] sm:$0xff]
    %v1300 = vld [vmem:[#allocation7 + $0xb0] sm:$0xff]
    %v1301 = vld [vmem:[#allocation7 + $0xb8] sm:$0xff]
    %v1302 = vld [vmem:[#allocation7 + $0xc0] sm:$0xff]
    %v1303 = vld [vmem:[#allocation7 + $0xc8] sm:$0xff]
    %v1304 = vld [vmem:[#allocation7 + $0xd0] sm:$0xff]
    %v1305 = vld [vmem:[#allocation7 + $0xd8] sm:$0xff]
    %v1306 = vld [vmem:[#allocation7 + $0xe0] sm:$0xff]
    %v1307 = vld [vmem:[#allocation7 + $0xe8] sm:$0xff]
    %v1308 = vld [vmem:[#allocation7 + $0xf0] sm:$0xff]
    %v1309 = vld [vmem:[#allocation7 + $0xf8] sm:$0xff]
    %v1310 = vld [vmem:[#allocation7 + $0x100] sm:$0xff]
    %v1311 = vld [vmem:[#allocation7 + $0x108] sm:$0xff]
    %v1312 = vld [vmem:[#allocation7 + $0x110] sm:$0xff]
    %v1313 = vld [vmem:[#allocation7 + $0x118] sm:$0xff]
    %v1350 = vunpack.c.l.b16 %v1278
    %v1351 = vunpack.c.h.b16 %v1278
    %v1352 = vunpack.c.l.b16 %v1279
    %v1353 = vunpack.c.h.b16 %v1279
    %v1354 = vunpack.c.l.b16 %v1280
    %v1355 = vunpack.c.h.b16 %v1280
    %v1356 = vunpack.c.l.b16 %v1281
    %v1357 = vunpack.c.h.b16 %v1281
    %v1358 = vunpack.c.l.b16 %v1282
    %v1359 = vunpack.c.h.b16 %v1282
    %v1360 = vunpack.c.l.b16 %v1283
    %v1361 = vunpack.c.h.b16 %v1283
    %v1362 = vunpack.c.l.b16 %v1284
    %v1363 = vunpack.c.h.b16 %v1284
    %v1364 = vunpack.c.l.b16 %v1285
    %v1365 = vunpack.c.h.b16 %v1285
    %v1366 = vunpack.c.l.b16 %v1286
    %v1367 = vunpack.c.h.b16 %v1286
    %v1368 = vunpack.c.l.b16 %v1287
    %v1369 = vunpack.c.h.b16 %v1287
    %v1370 = vunpack.c.l.b16 %v1288
    %v1371 = vunpack.c.h.b16 %v1288
    %v1372 = vunpack.c.l.b16 %v1289
    %v1373 = vunpack.c.h.b16 %v1289
    %v1374 = vunpack.c.l.b16 %v1290
    %v1375 = vunpack.c.h.b16 %v1290
    %v1376 = vunpack.c.l.b16 %v1291
    %v1377 = vunpack.c.h.b16 %v1291
    %v1378 = vunpack.c.l.b16 %v1292
    %v1379 = vunpack.c.h.b16 %v1292
    %v1380 = vunpack.c.l.b16 %v1293
    %v1381 = vunpack.c.h.b16 %v1293
    %v1382 = vunpack.c.l.b16 %v1294
    %v1383 = vunpack.c.h.b16 %v1294
    %v1384 = vunpack.c.l.b16 %v1295
    %v1385 = vunpack.c.h.b16 %v1295
    %v1386 = vunpack.c.l.b16 %v1296
    %v1387 = vunpack.c.h.b16 %v1296
    %v1388 = vunpack.c.l.b16 %v1297
    %v1389 = vunpack.c.h.b16 %v1297
    %v1390 = vunpack.c.l.b16 %v1298
    %v1391 = vunpack.c.h.b16 %v1298
    %v1392 = vunpack.c.l.b16 %v1299
    %v1393 = vunpack.c.h.b16 %v1299
    %v1394 = vunpack.c.l.b16 %v1300
    %v1395 = vunpack.c.h.b16 %v1300
    %v1396 = vunpack.c.l.b16 %v1301
    %v1397 = vunpack.c.h.b16 %v1301
    %v1398 = vunpack.c.l.b16 %v1302
    %v1399 = vunpack.c.h.b16 %v1302
    %v1400 = vunpack.c.l.b16 %v1303
    %v1401 = vunpack.c.h.b16 %v1303
    %v1402 = vunpack.c.l.b16 %v1304
    %v1403 = vunpack.c.h.b16 %v1304
    %v1404 = vunpack.c.l.b16 %v1305
    %v1405 = vunpack.c.h.b16 %v1305
    %v1406 = vunpack.c.l.b16 %v1306
    %v1407 = vunpack.c.h.b16 %v1306
    %v1408 = vunpack.c.l.b16 %v1307
    %v1409 = vunpack.c.h.b16 %v1307
    %v1410 = vunpack.c.l.b16 %v1308
    %v1411 = vunpack.c.h.b16 %v1308
    %v1412 = vunpack.c.l.b16 %v1309
    %v1413 = vunpack.c.h.b16 %v1309
    %v1414 = vunpack.c.l.b16 %v1310
    %v1415 = vunpack.c.h.b16 %v1310
    %v1416 = vunpack.c.l.b16 %v1311
    %v1417 = vunpack.c.h.b16 %v1311
    %v1418 = vunpack.c.l.b16 %v1312
    %v1419 = vunpack.c.h.b16 %v1312
    %v1420 = vunpack.c.l.b16 %v1313
    %v1421 = vunpack.c.h.b16 %v1313
    %v1422 = vpack.c.b16 %v1352, %v1350
    %v1423 = vpack.c.b16 %v1353, %v1351
    %v1424 = vpack.c.b16 %v1356, %v1354
    %v1425 = vpack.c.b16 %v1357, %v1355
    %v1426 = vpack.c.b16 %v1360, %v1358
    %v1427 = vpack.c.b16 %v1361, %v1359
    %v1428 = vpack.c.b16 %v1364, %v1362
    %v1429 = vpack.c.b16 %v1365, %v1363
    %v1430 = vpack.c.b16 %v1368, %v1366
    %v1431 = vpack.c.b16 %v1369, %v1367
    %v1432 = vpack.c.b16 %v1372, %v1370
    %v1433 = vpack.c.b16 %v1373, %v1371
    %v1434 = vpack.c.b16 %v1376, %v1374
    %v1435 = vpack.c.b16 %v1377, %v1375
    %v1436 = vpack.c.b16 %v1380, %v1378
    %v1437 = vpack.c.b16 %v1381, %v1379
    %v1438 = vpack.c.b16 %v1384, %v1382
    %v1439 = vpack.c.b16 %v1385, %v1383
    %v1440 = vpack.c.b16 %v1388, %v1386
    %v1441 = vpack.c.b16 %v1389, %v1387
    %v1442 = vpack.c.b16 %v1392, %v1390
    %v1443 = vpack.c.b16 %v1393, %v1391
    %v1444 = vpack.c.b16 %v1396, %v1394
    %v1445 = vpack.c.b16 %v1397, %v1395
    %v1446 = vpack.c.b16 %v1400, %v1398
    %v1447 = vpack.c.b16 %v1401, %v1399
    %v1448 = vpack.c.b16 %v1404, %v1402
    %v1449 = vpack.c.b16 %v1405, %v1403
    %v1450 = vpack.c.b16 %v1408, %v1406
    %v1451 = vpack.c.b16 %v1409, %v1407
    %v1452 = vpack.c.b16 %v1412, %v1410
    %v1453 = vpack.c.b16 %v1413, %v1411
    %v1454 = vpack.c.b16 %v1416, %v1414
    %v1455 = vpack.c.b16 %v1417, %v1415
    %v1456 = vpack.c.b16 %v1420, %v1418
    %v1457 = vpack.c.b16 %v1421, %v1419
    %1494 = vmatprep.subr.bf16.mxu0 %v1437
    %1495 = vmatpush1.bf16.msra.mxu0 %v1436
    %1496 = vmatprep.subr.bf16.mxu0 %v1435
    %1497 = vmatpush1.bf16.msra.mxu0 %v1434
    %1498 = vmatprep.subr.bf16.mxu0 %v1433
    %1499 = vmatpush1.bf16.msra.mxu0 %v1432
    %1500 = vmatprep.subr.bf16.mxu0 %v1431
    %1501 = vmatpush1.bf16.msra.mxu0 %v1430
    %1502 = vmatprep.subr.bf16.mxu0 %v1429
    %1503 = vmatpush1.bf16.msra.mxu0 %v1428
    %1504 = vmatprep.subr.bf16.mxu0 %v1427
    %1505 = vmatpush1.bf16.msra.mxu0 %v1426
    %1506 = vmatprep.subr.bf16.mxu0 %v1425
    %1507 = vmatpush1.bf16.msra.mxu0 %v1424
    %1508 = vmatprep.subr.bf16.mxu0 %v1423
    %1509 = vmatpush1.bf16.msra.mxu0 %v1422
    %1510 = vmatprep.subr.bf16.mxu0 %v1453
    %1511 = vmatpush2.bf16.msra.mxu0 %v1452
    %1512 = vmatprep.subr.bf16.mxu0 %v1451
    %1513 = vmatpush2.bf16.msra.mxu0 %v1450
    %1514 = vmatprep.subr.bf16.mxu0 %v1449
    %1515 = vmatpush2.bf16.msra.mxu0 %v1448
    %1516 = vmatprep.subr.bf16.mxu0 %v1447
    %1517 = vmatpush2.bf16.msra.mxu0 %v1446
    %1518 = vmatprep.subr.bf16.mxu0 %v1445
    %1519 = vmatpush2.bf16.msra.mxu0 %v1444
    %1520 = vmatprep.subr.bf16.mxu0 %v1443
    %1521 = vmatpush2.bf16.msra.mxu0 %v1442
    %1522 = vmatprep.subr.bf16.mxu0 %v1441
    %1523 = vmatpush2.bf16.msra.mxu0 %v1440
    %1524 = vmatprep.subr.bf16.mxu0 %v1439
    %1525 = vmatpush2.bf16.msra.mxu0 %v1438
    %1526 = vmatprep.mubr.bf16.mxu0 %v153
    %1527 = vmatmul.mubr.bf16.gmra.mxu0 %v152
    %v1528 = vpop.f32.mrf.mxu0
    %v1529 = vadd.f32 0.0, %v1528
    %v1530 = vpop.f32.mrf.mxu0
    %v1531 = vadd.f32 0.0, %v1530
    %v1532 = vpop.f32.mrf.mxu0
    %v1533 = vadd.f32 0.0, %v1532
    %v1534 = vpop.f32.mrf.mxu0
    %v1535 = vadd.f32 0.0, %v1534
    %1536 = vdwg.mxu0
    %1537 = vmatprep.subr.bf16.mxu0 0
    %1538 = vmatpush1.bf16.msra.mxu0 0
    %1539 = vmatprep.subr.bf16.mxu0 0
    %1540 = vmatpush1.bf16.msra.mxu0 0
    %1541 = vmatprep.subr.bf16.mxu0 0
    %1542 = vmatpush1.bf16.msra.mxu0 0
    %1543 = vmatprep.subr.bf16.mxu0 0
    %1544 = vmatpush1.bf16.msra.mxu0 0
    %1545 = vmatprep.subr.bf16.mxu0 0
    %1546 = vmatpush1.bf16.msra.mxu0 0
    %1547 = vmatprep.subr.bf16.mxu0 0
    %1548 = vmatpush1.bf16.msra.mxu0 0
    %1549 = vmatprep.subr.bf16.mxu0 %v1457
    %1550 = vmatpush1.bf16.msra.mxu0 %v1456
    %1551 = vmatprep.subr.bf16.mxu0 %v1455
    %1552 = vmatpush1.bf16.msra.mxu0 %v1454
    %1553 = vmatprep.subr.bf16.mxu0 0
    %1554 = vmatpush2.bf16.msra.mxu0 0
    %1555 = vmatprep.subr.bf16.mxu0 0
    %1556 = vmatpush2.bf16.msra.mxu0 0
    %1557 = vmatprep.subr.bf16.mxu0 0
    %1558 = vmatpush2.bf16.msra.mxu0 0
    %1559 = vmatprep.subr.bf16.mxu0 0
    %1560 = vmatpush2.bf16.msra.mxu0 0
    %1561 = vmatprep.subr.bf16.mxu0 0
    %1562 = vmatpush2.bf16.msra.mxu0 0
    %1563 = vmatprep.subr.bf16.mxu0 0
    %1564 = vmatpush2.bf16.msra.mxu0 0
    %1565 = vmatprep.subr.bf16.mxu0 0
    %1566 = vmatpush2.bf16.msra.mxu0 0
    %1567 = vmatprep.subr.bf16.mxu0 0
    %1568 = vmatpush2.bf16.msra.mxu0 0
    %1569 = vmatprep.mubr.bf16.mxu0 0
    %1570 = vmatmul.mubr.bf16.gmra.mxu0 %v961
    %v1571 = vpop.f32.mrf.mxu0
    %v1572 = vadd.f32 %v1529, %v1571
    %v1573 = vpop.f32.mrf.mxu0
    %v1574 = vadd.f32 %v1531, %v1573
    %v1575 = vpop.f32.mrf.mxu0
    %v1576 = vadd.f32 %v1533, %v1575
    %v1577 = vpop.f32.mrf.mxu0
    %v1578 = vadd.f32 %v1535, %v1577
    %1579 = vdwg.mxu0
    %v1676 = vunpack.c.l.b16 %v1182
    %v1677 = vunpack.c.h.b16 %v1182
    %v1678 = vunpack.c.l.b16 %v1183
    %v1679 = vunpack.c.h.b16 %v1183
    %v1680 = vunpack.c.l.b16 %v1184
    %v1681 = vunpack.c.h.b16 %v1184
    %v1682 = vunpack.c.l.b16 %v1185
    %v1683 = vunpack.c.h.b16 %v1185
    %v1684 = vunpack.c.l.b16 %v1186
    %v1685 = vunpack.c.h.b16 %v1186
    %v1686 = vunpack.c.l.b16 %v1187
    %v1687 = vunpack.c.h.b16 %v1187
    %v1688 = vunpack.c.l.b16 %v1188
    %v1689 = vunpack.c.h.b16 %v1188
    %v1690 = vunpack.c.l.b16 %v1189
    %v1691 = vunpack.c.h.b16 %v1189
    %v1692 = vunpack.c.l.b16 %v1190
    %v1693 = vunpack.c.h.b16 %v1190
    %v1694 = vunpack.c.l.b16 %v1191
    %v1695 = vunpack.c.h.b16 %v1191
    %v1696 = vunpack.c.l.b16 %v1192
    %v1697 = vunpack.c.h.b16 %v1192
    %v1698 = vunpack.c.l.b16 %v1193
    %v1699 = vunpack.c.h.b16 %v1193
    %v1700 = vunpack.c.l.b16 %v1194
    %v1701 = vunpack.c.h.b16 %v1194
    %v1702 = vunpack.c.l.b16 %v1195
    %v1703 = vunpack.c.h.b16 %v1195
    %v1704 = vunpack.c.l.b16 %v1196
    %v1705 = vunpack.c.h.b16 %v1196
    %v1706 = vunpack.c.l.b16 %v1197
    %v1707 = vunpack.c.h.b16 %v1197
    %v1708 = vunpack.c.l.b16 %v1198
    %v1709 = vunpack.c.h.b16 %v1198
    %v1710 = vunpack.c.l.b16 %v1199
    %v1711 = vunpack.c.h.b16 %v1199
    %v1712 = vunpack.c.l.b16 %v1200
    %v1713 = vunpack.c.h.b16 %v1200
    %v1714 = vunpack.c.l.b16 %v1201
    %v1715 = vunpack.c.h.b16 %v1201
    %v1716 = vunpack.c.l.b16 %v1202
    %v1717 = vunpack.c.h.b16 %v1202
    %v1718 = vunpack.c.l.b16 %v1203
    %v1719 = vunpack.c.h.b16 %v1203
    %v1720 = vunpack.c.l.b16 %v1204
    %v1721 = vunpack.c.h.b16 %v1204
    %v1722 = vunpack.c.l.b16 %v1205
    %v1723 = vunpack.c.h.b16 %v1205
    %v1724 = vunpack.c.l.b16 %v1206
    %v1725 = vunpack.c.h.b16 %v1206
    %v1726 = vunpack.c.l.b16 %v1207
    %v1727 = vunpack.c.h.b16 %v1207
    %v1728 = vunpack.c.l.b16 %v1208
    %v1729 = vunpack.c.h.b16 %v1208
    %v1730 = vunpack.c.l.b16 %v1209
    %v1731 = vunpack.c.h.b16 %v1209
    %v1732 = vunpack.c.l.b16 %v1210
    %v1733 = vunpack.c.h.b16 %v1210
    %v1734 = vunpack.c.l.b16 %v1211
    %v1735 = vunpack.c.h.b16 %v1211
    %v1736 = vunpack.c.l.b16 %v1212
    %v1737 = vunpack.c.h.b16 %v1212
    %v1738 = vunpack.c.l.b16 %v1213
    %v1739 = vunpack.c.h.b16 %v1213
    %v1740 = vunpack.c.l.b16 %v1214
    %v1741 = vunpack.c.h.b16 %v1214
    %v1742 = vunpack.c.l.b16 %v1215
    %v1743 = vunpack.c.h.b16 %v1215
    %v1744 = vunpack.c.l.b16 %v1216
    %v1745 = vunpack.c.h.b16 %v1216
    %v1746 = vunpack.c.l.b16 %v1217
    %v1747 = vunpack.c.h.b16 %v1217
    %v1748 = vunpack.c.l.b16 %v1218
    %v1749 = vunpack.c.h.b16 %v1218
    %v1750 = vunpack.c.l.b16 %v1219
    %v1751 = vunpack.c.h.b16 %v1219
    %v1752 = vunpack.c.l.b16 %v1220
    %v1753 = vunpack.c.h.b16 %v1220
    %v1754 = vunpack.c.l.b16 %v1221
    %v1755 = vunpack.c.h.b16 %v1221
    %v1756 = vunpack.c.l.b16 %v1222
    %v1757 = vunpack.c.h.b16 %v1222
    %v1758 = vunpack.c.l.b16 %v1223
    %v1759 = vunpack.c.h.b16 %v1223
    %v1760 = vunpack.c.l.b16 %v1224
    %v1761 = vunpack.c.h.b16 %v1224
    %v1762 = vunpack.c.l.b16 %v1225
    %v1763 = vunpack.c.h.b16 %v1225
    %v1764 = vunpack.c.l.b16 %v1226
    %v1765 = vunpack.c.h.b16 %v1226
    %v1766 = vunpack.c.l.b16 %v1227
    %v1767 = vunpack.c.h.b16 %v1227
    %v1768 = vunpack.c.l.b16 %v1228
    %v1769 = vunpack.c.h.b16 %v1228
    %v1770 = vunpack.c.l.b16 %v1229
    %v1771 = vunpack.c.h.b16 %v1229
    %v1772 = vunpack.c.l.b16 %v1230
    %v1773 = vunpack.c.h.b16 %v1230
    %v1774 = vunpack.c.l.b16 %v1231
    %v1775 = vunpack.c.h.b16 %v1231
    %v1776 = vunpack.c.l.b16 %v1232
    %v1777 = vunpack.c.h.b16 %v1232
    %v1778 = vunpack.c.l.b16 %v1233
    %v1779 = vunpack.c.h.b16 %v1233
    %v1780 = vunpack.c.l.b16 %v1234
    %v1781 = vunpack.c.h.b16 %v1234
    %v1782 = vunpack.c.l.b16 %v1235
    %v1783 = vunpack.c.h.b16 %v1235
    %v1784 = vunpack.c.l.b16 %v1236
    %v1785 = vunpack.c.h.b16 %v1236
    %v1786 = vunpack.c.l.b16 %v1237
    %v1787 = vunpack.c.h.b16 %v1237
    %v1788 = vunpack.c.l.b16 %v1238
    %v1789 = vunpack.c.h.b16 %v1238
    %v1790 = vunpack.c.l.b16 %v1239
    %v1791 = vunpack.c.h.b16 %v1239
    %v1792 = vunpack.c.l.b16 %v1240
    %v1793 = vunpack.c.h.b16 %v1240
    %v1794 = vunpack.c.l.b16 %v1241
    %v1795 = vunpack.c.h.b16 %v1241
    %v1796 = vunpack.c.l.b16 %v1242
    %v1797 = vunpack.c.h.b16 %v1242
    %v1798 = vunpack.c.l.b16 %v1243
    %v1799 = vunpack.c.h.b16 %v1243
    %v1800 = vunpack.c.l.b16 %v1244
    %v1801 = vunpack.c.h.b16 %v1244
    %v1802 = vunpack.c.l.b16 %v1245
    %v1803 = vunpack.c.h.b16 %v1245
    %v1804 = vunpack.c.l.b16 %v1246
    %v1805 = vunpack.c.h.b16 %v1246
    %v1806 = vunpack.c.l.b16 %v1247
    %v1807 = vunpack.c.h.b16 %v1247
    %v1808 = vunpack.c.l.b16 %v1248
    %v1809 = vunpack.c.h.b16 %v1248
    %v1810 = vunpack.c.l.b16 %v1249
    %v1811 = vunpack.c.h.b16 %v1249
    %v1812 = vunpack.c.l.b16 %v1250
    %v1813 = vunpack.c.h.b16 %v1250
    %v1814 = vunpack.c.l.b16 %v1251
    %v1815 = vunpack.c.h.b16 %v1251
    %v1816 = vunpack.c.l.b16 %v1252
    %v1817 = vunpack.c.h.b16 %v1252
    %v1818 = vunpack.c.l.b16 %v1253
    %v1819 = vunpack.c.h.b16 %v1253
    %v1820 = vunpack.c.l.b16 %v1254
    %v1821 = vunpack.c.h.b16 %v1254
    %v1822 = vunpack.c.l.b16 %v1255
    %v1823 = vunpack.c.h.b16 %v1255
    %v1824 = vunpack.c.l.b16 %v1256
    %v1825 = vunpack.c.h.b16 %v1256
    %v1826 = vunpack.c.l.b16 %v1257
    %v1827 = vunpack.c.h.b16 %v1257
    %v1828 = vunpack.c.l.b16 %v1258
    %v1829 = vunpack.c.h.b16 %v1258
    %v1830 = vunpack.c.l.b16 %v1259
    %v1831 = vunpack.c.h.b16 %v1259
    %v1832 = vunpack.c.l.b16 %v1260
    %v1833 = vunpack.c.h.b16 %v1260
    %v1834 = vunpack.c.l.b16 %v1261
    %v1835 = vunpack.c.h.b16 %v1261
    %v1836 = vunpack.c.l.b16 %v1262
    %v1837 = vunpack.c.h.b16 %v1262
    %v1838 = vunpack.c.l.b16 %v1263
    %v1839 = vunpack.c.h.b16 %v1263
    %v1840 = vunpack.c.l.b16 %v1264
    %v1841 = vunpack.c.h.b16 %v1264
    %v1842 = vunpack.c.l.b16 %v1265
    %v1843 = vunpack.c.h.b16 %v1265
    %v1844 = vunpack.c.l.b16 %v1266
    %v1845 = vunpack.c.h.b16 %v1266
    %v1846 = vunpack.c.l.b16 %v1267
    %v1847 = vunpack.c.h.b16 %v1267
    %v1848 = vunpack.c.l.b16 %v1268
    %v1849 = vunpack.c.h.b16 %v1268
    %v1850 = vunpack.c.l.b16 %v1269
    %v1851 = vunpack.c.h.b16 %v1269
    %v1852 = vunpack.c.l.b16 %v1270
    %v1853 = vunpack.c.h.b16 %v1270
    %v1854 = vunpack.c.l.b16 %v1271
    %v1855 = vunpack.c.h.b16 %v1271
    %v1856 = vunpack.c.l.b16 %v1272
    %v1857 = vunpack.c.h.b16 %v1272
    %v1858 = vunpack.c.l.b16 %v1273
    %v1859 = vunpack.c.h.b16 %v1273
    %v1860 = vunpack.c.l.b16 %v1274
    %v1861 = vunpack.c.h.b16 %v1274
    %v1862 = vunpack.c.l.b16 %v1275
    %v1863 = vunpack.c.h.b16 %v1275
    %v1864 = vunpack.c.l.b16 %v1276
    %v1865 = vunpack.c.h.b16 %v1276
    %v1866 = vunpack.c.l.b16 %v1277
    %v1867 = vunpack.c.h.b16 %v1277
    %v1868 = vpack.c.b16 %v1678, %v1676
    %v1869 = vpack.c.b16 %v1679, %v1677
    %v1870 = vpack.c.b16 %v1682, %v1680
    %v1871 = vpack.c.b16 %v1683, %v1681
    %v1872 = vpack.c.b16 %v1686, %v1684
    %v1873 = vpack.c.b16 %v1687, %v1685
    %v1874 = vpack.c.b16 %v1690, %v1688
    %v1875 = vpack.c.b16 %v1691, %v1689
    %v1876 = vpack.c.b16 %v1694, %v1692
    %v1877 = vpack.c.b16 %v1695, %v1693
    %v1878 = vpack.c.b16 %v1698, %v1696
    %v1879 = vpack.c.b16 %v1699, %v1697
    %v1880 = vpack.c.b16 %v1702, %v1700
    %v1881 = vpack.c.b16 %v1703, %v1701
    %v1882 = vpack.c.b16 %v1706, %v1704
    %v1883 = vpack.c.b16 %v1707, %v1705
    %v1884 = vpack.c.b16 %v1710, %v1708
    %v1885 = vpack.c.b16 %v1711, %v1709
    %v1886 = vpack.c.b16 %v1714, %v1712
    %v1887 = vpack.c.b16 %v1715, %v1713
    %v1888 = vpack.c.b16 %v1718, %v1716
    %v1889 = vpack.c.b16 %v1719, %v1717
    %v1890 = vpack.c.b16 %v1722, %v1720
    %v1891 = vpack.c.b16 %v1723, %v1721
    %v1892 = vpack.c.b16 %v1726, %v1724
    %v1893 = vpack.c.b16 %v1727, %v1725
    %v1894 = vpack.c.b16 %v1730, %v1728
    %v1895 = vpack.c.b16 %v1731, %v1729
    %v1896 = vpack.c.b16 %v1734, %v1732
    %v1897 = vpack.c.b16 %v1735, %v1733
    %v1898 = vpack.c.b16 %v1738, %v1736
    %v1899 = vpack.c.b16 %v1739, %v1737
    %v1900 = vpack.c.b16 %v1742, %v1740
    %v1901 = vpack.c.b16 %v1743, %v1741
    %v1902 = vpack.c.b16 %v1746, %v1744
    %v1903 = vpack.c.b16 %v1747, %v1745
    %v1904 = vpack.c.b16 %v1750, %v1748
    %v1905 = vpack.c.b16 %v1751, %v1749
    %v1906 = vpack.c.b16 %v1754, %v1752
    %v1907 = vpack.c.b16 %v1755, %v1753
    %v1908 = vpack.c.b16 %v1758, %v1756
    %v1909 = vpack.c.b16 %v1759, %v1757
    %v1910 = vpack.c.b16 %v1762, %v1760
    %v1911 = vpack.c.b16 %v1763, %v1761
    %v1912 = vpack.c.b16 %v1766, %v1764
    %v1913 = vpack.c.b16 %v1767, %v1765
    %v1914 = vpack.c.b16 %v1770, %v1768
    %v1915 = vpack.c.b16 %v1771, %v1769
    %v1916 = vpack.c.b16 %v1774, %v1772
    %v1917 = vpack.c.b16 %v1775, %v1773
    %v1918 = vpack.c.b16 %v1778, %v1776
    %v1919 = vpack.c.b16 %v1779, %v1777
    %v1920 = vpack.c.b16 %v1782, %v1780
    %v1921 = vpack.c.b16 %v1783, %v1781
    %v1922 = vpack.c.b16 %v1786, %v1784
    %v1923 = vpack.c.b16 %v1787, %v1785
    %v1924 = vpack.c.b16 %v1790, %v1788
    %v1925 = vpack.c.b16 %v1791, %v1789
    %v1926 = vpack.c.b16 %v1794, %v1792
    %v1927 = vpack.c.b16 %v1795, %v1793
    %v1928 = vpack.c.b16 %v1798, %v1796
    %v1929 = vpack.c.b16 %v1799, %v1797
    %v1930 = vpack.c.b16 %v1802, %v1800
    %v1931 = vpack.c.b16 %v1803, %v1801
    %v1932 = vpack.c.b16 %v1806, %v1804
    %v1933 = vpack.c.b16 %v1807, %v1805
    %v1934 = vpack.c.b16 %v1810, %v1808
    %v1935 = vpack.c.b16 %v1811, %v1809
    %v1936 = vpack.c.b16 %v1814, %v1812
    %v1937 = vpack.c.b16 %v1815, %v1813
    %v1938 = vpack.c.b16 %v1818, %v1816
    %v1939 = vpack.c.b16 %v1819, %v1817
    %v1940 = vpack.c.b16 %v1822, %v1820
    %v1941 = vpack.c.b16 %v1823, %v1821
    %v1942 = vpack.c.b16 %v1826, %v1824
    %v1943 = vpack.c.b16 %v1827, %v1825
    %v1944 = vpack.c.b16 %v1830, %v1828
    %v1945 = vpack.c.b16 %v1831, %v1829
    %v1946 = vpack.c.b16 %v1834, %v1832
    %v1947 = vpack.c.b16 %v1835, %v1833
    %v1948 = vpack.c.b16 %v1838, %v1836
    %v1949 = vpack.c.b16 %v1839, %v1837
    %v1950 = vpack.c.b16 %v1842, %v1840
    %v1951 = vpack.c.b16 %v1843, %v1841
    %v1952 = vpack.c.b16 %v1846, %v1844
    %v1953 = vpack.c.b16 %v1847, %v1845
    %v1954 = vpack.c.b16 %v1850, %v1848
    %v1955 = vpack.c.b16 %v1851, %v1849
    %v1956 = vpack.c.b16 %v1854, %v1852
    %v1957 = vpack.c.b16 %v1855, %v1853
    %v1958 = vpack.c.b16 %v1858, %v1856
    %v1959 = vpack.c.b16 %v1859, %v1857
    %v1960 = vpack.c.b16 %v1862, %v1860
    %v1961 = vpack.c.b16 %v1863, %v1861
    %v1962 = vpack.c.b16 %v1866, %v1864
    %v1963 = vpack.c.b16 %v1867, %v1865
    %2060 = vmatprep.subr.bf16.mxu0 %v1883
    %2061 = vmatpush1.bf16.msra.mxu0 %v1882
    %2062 = vmatprep.subr.bf16.mxu0 %v1881
    %2063 = vmatpush1.bf16.msra.mxu0 %v1880
    %2064 = vmatprep.subr.bf16.mxu0 %v1879
    %2065 = vmatpush1.bf16.msra.mxu0 %v1878
    %2066 = vmatprep.subr.bf16.mxu0 %v1877
    %2067 = vmatpush1.bf16.msra.mxu0 %v1876
    %2068 = vmatprep.subr.bf16.mxu0 %v1875
    %2069 = vmatpush1.bf16.msra.mxu0 %v1874
    %2070 = vmatprep.subr.bf16.mxu0 %v1873
    %2071 = vmatpush1.bf16.msra.mxu0 %v1872
    %2072 = vmatprep.subr.bf16.mxu0 %v1871
    %2073 = vmatpush1.bf16.msra.mxu0 %v1870
    %2074 = vmatprep.subr.bf16.mxu0 %v1869
    %2075 = vmatpush1.bf16.msra.mxu0 %v1868
    %2076 = vmatprep.subr.bf16.mxu0 %v1899
    %2077 = vmatpush2.bf16.msra.mxu0 %v1898
    %2078 = vmatprep.subr.bf16.mxu0 %v1897
    %2079 = vmatpush2.bf16.msra.mxu0 %v1896
    %2080 = vmatprep.subr.bf16.mxu0 %v1895
    %2081 = vmatpush2.bf16.msra.mxu0 %v1894
    %2082 = vmatprep.subr.bf16.mxu0 %v1893
    %2083 = vmatpush2.bf16.msra.mxu0 %v1892
    %2084 = vmatprep.subr.bf16.mxu0 %v1891
    %2085 = vmatpush2.bf16.msra.mxu0 %v1890
    %2086 = vmatprep.subr.bf16.mxu0 %v1889
    %2087 = vmatpush2.bf16.msra.mxu0 %v1888
    %2088 = vmatprep.subr.bf16.mxu0 %v1887
    %2089 = vmatpush2.bf16.msra.mxu0 %v1886
    %2090 = vmatprep.subr.bf16.mxu0 %v1885
    %2091 = vmatpush2.bf16.msra.mxu0 %v1884
    %2092 = vmatprep.mubr.bf16.mxu0 %v141
    %2093 = vmatmul.mubr.bf16.gmra.mxu0 %v140
    %v2094 = vpop.f32.mrf.mxu0
    %v2095 = vadd.f32 %v1572, %v2094
    %v2096 = vpop.f32.mrf.mxu0
    %v2097 = vadd.f32 %v1574, %v2096
    %v2098 = vpop.f32.mrf.mxu0
    %v2099 = vadd.f32 %v1576, %v2098
    %v2100 = vpop.f32.mrf.mxu0
    %v2101 = vadd.f32 %v1578, %v2100
    %2102 = vdwg.mxu0
    %2103 = vmatprep.subr.bf16.mxu0 %v1915
    %2104 = vmatpush1.bf16.msra.mxu0 %v1914
    %2105 = vmatprep.subr.bf16.mxu0 %v1913
    %2106 = vmatpush1.bf16.msra.mxu0 %v1912
    %2107 = vmatprep.subr.bf16.mxu0 %v1911
    %2108 = vmatpush1.bf16.msra.mxu0 %v1910
    %2109 = vmatprep.subr.bf16.mxu0 %v1909
    %2110 = vmatpush1.bf16.msra.mxu0 %v1908
    %2111 = vmatprep.subr.bf16.mxu0 %v1907
    %2112 = vmatpush1.bf16.msra.mxu0 %v1906
    %2113 = vmatprep.subr.bf16.mxu0 %v1905
    %2114 = vmatpush1.bf16.msra.mxu0 %v1904
    %2115 = vmatprep.subr.bf16.mxu0 %v1903
    %2116 = vmatpush1.bf16.msra.mxu0 %v1902
    %2117 = vmatprep.subr.bf16.mxu0 %v1901
    %2118 = vmatpush1.bf16.msra.mxu0 %v1900
    %2119 = vmatprep.subr.bf16.mxu0 %v1931
    %2120 = vmatpush2.bf16.msra.mxu0 %v1930
    %2121 = vmatprep.subr.bf16.mxu0 %v1929
    %2122 = vmatpush2.bf16.msra.mxu0 %v1928
    %2123 = vmatprep.subr.bf16.mxu0 %v1927
    %2124 = vmatpush2.bf16.msra.mxu0 %v1926
    %2125 = vmatprep.subr.bf16.mxu0 %v1925
    %2126 = vmatpush2.bf16.msra.mxu0 %v1924
    %2127 = vmatprep.subr.bf16.mxu0 %v1923
    %2128 = vmatpush2.bf16.msra.mxu0 %v1922
    %2129 = vmatprep.subr.bf16.mxu0 %v1921
    %2130 = vmatpush2.bf16.msra.mxu0 %v1920
    %2131 = vmatprep.subr.bf16.mxu0 %v1919
    %2132 = vmatpush2.bf16.msra.mxu0 %v1918
    %2133 = vmatprep.subr.bf16.mxu0 %v1917
    %2134 = vmatpush2.bf16.msra.mxu0 %v1916
    %2135 = vmatprep.mubr.bf16.mxu0 %v143
    %2136 = vmatmul.mubr.bf16.gmra.mxu0 %v142
    %v2137 = vpop.f32.mrf.mxu0
    %v2138 = vadd.f32 %v2095, %v2137
    %v2139 = vpop.f32.mrf.mxu0
    %v2140 = vadd.f32 %v2097, %v2139
    %v2141 = vpop.f32.mrf.mxu0
    %v2142 = vadd.f32 %v2099, %v2141
    %v2143 = vpop.f32.mrf.mxu0
    %v2144 = vadd.f32 %v2101, %v2143
    %2145 = vdwg.mxu0
    %2146 = vmatprep.subr.bf16.mxu0 %v1947
    %2147 = vmatpush1.bf16.msra.mxu0 %v1946
    %2148 = vmatprep.subr.bf16.mxu0 %v1945
    %2149 = vmatpush1.bf16.msra.mxu0 %v1944
    %2150 = vmatprep.subr.bf16.mxu0 %v1943
    %2151 = vmatpush1.bf16.msra.mxu0 %v1942
    %2152 = vmatprep.subr.bf16.mxu0 %v1941
    %2153 = vmatpush1.bf16.msra.mxu0 %v1940
    %2154 = vmatprep.subr.bf16.mxu0 %v1939
    %2155 = vmatpush1.bf16.msra.mxu0 %v1938
    %2156 = vmatprep.subr.bf16.mxu0 %v1937
    %2157 = vmatpush1.bf16.msra.mxu0 %v1936
    %2158 = vmatprep.subr.bf16.mxu0 %v1935
    %2159 = vmatpush1.bf16.msra.mxu0 %v1934
    %2160 = vmatprep.subr.bf16.mxu0 %v1933
    %2161 = vmatpush1.bf16.msra.mxu0 %v1932
    %2162 = vmatprep.subr.bf16.mxu0 %v1963
    %2163 = vmatpush2.bf16.msra.mxu0 %v1962
    %2164 = vmatprep.subr.bf16.mxu0 %v1961
    %2165 = vmatpush2.bf16.msra.mxu0 %v1960
    %2166 = vmatprep.subr.bf16.mxu0 %v1959
    %2167 = vmatpush2.bf16.msra.mxu0 %v1958
    %2168 = vmatprep.subr.bf16.mxu0 %v1957
    %2169 = vmatpush2.bf16.msra.mxu0 %v1956
    %2170 = vmatprep.subr.bf16.mxu0 %v1955
    %2171 = vmatpush2.bf16.msra.mxu0 %v1954
    %2172 = vmatprep.subr.bf16.mxu0 %v1953
    %2173 = vmatpush2.bf16.msra.mxu0 %v1952
    %2174 = vmatprep.subr.bf16.mxu0 %v1951
    %2175 = vmatpush2.bf16.msra.mxu0 %v1950
    %2176 = vmatprep.subr.bf16.mxu0 %v1949
    %2177 = vmatpush2.bf16.msra.mxu0 %v1948
    %2178 = vmatprep.mubr.bf16.mxu0 %v145
    %2179 = vmatmul.mubr.bf16.gmra.mxu0 %v144
    %v2180 = vpop.f32.mrf.mxu0
    %v2181 = vadd.f32 %v2138, %v2180
    %v2182 = vpop.f32.mrf.mxu0
    %v2183 = vadd.f32 %v2140, %v2182
    %v2184 = vpop.f32.mrf.mxu0
    %v2185 = vadd.f32 %v2142, %v2184
    %v2186 = vpop.f32.mrf.mxu0
    %v2187 = vadd.f32 %v2144, %v2186
    %2188 = vdwg.mxu0
    %v2189 = vld [vmem:[#allocation9] sm:$0x3]
    %v2191 = vlaneseq
    %v2192 = vshrl.u32 %v2191, 7
    %v2193 = vsub.s32 0, %v2192
    %v2194 = vrot.slane %v2189, %v2193
    %v2195 = vlaneseq
    %v2196 = vshrl.u32 %v2195, 7
    %v2197 = vsub.s32 1, %v2196
    %v2198 = vrot.slane %v2189, %v2197
    %v2201 = vadd.f32 %v2181, %v2194
    %v2202 = vadd.f32 %v2183, %v2198
    %v2203 = vadd.f32 %v2185, %v2194
    %v2204 = vadd.f32 %v2187, %v2198
    %v2205 = vtanh.pop %v2201
    %v2206 = vtanh.pop %v2202
    %v2207 = vtanh.pop %v2203
    %v2208 = vtanh.pop %v2204
    %v2209 = vpack.c.bf16 %v2207, %v2205
    %v2210 = vpack.c.bf16 %v2208, %v2206
    %v2211 = vld [vmem:[#allocation10] sm:$0xff]
    %v2212 = vld [vmem:[#allocation10 + $0x8] sm:$0xff]
    %v2213 = vld [vmem:[#allocation10 + $0x10] sm:$0xff]
    %v2214 = vld [vmem:[#allocation10 + $0x18] sm:$0xff]
    %v2215 = vld [vmem:[#allocation10 + $0x20] sm:$0xff]
    %v2216 = vld [vmem:[#allocation10 + $0x28] sm:$0xff]
    %v2217 = vld [vmem:[#allocation10 + $0x30] sm:$0xff]
    %v2218 = vld [vmem:[#allocation10 + $0x38] sm:$0xff]
    %v2219 = vld [vmem:[#allocation10 + $0x40] sm:$0xff]
    %v2220 = vld [vmem:[#allocation10 + $0x48] sm:$0xff]
    %v2221 = vld [vmem:[#allocation10 + $0x50] sm:$0xff]
    %v2222 = vld [vmem:[#allocation10 + $0x58] sm:$0xff]
    %v2223 = vld [vmem:[#allocation10 + $0x60] sm:$0xff]
    %v2224 = vld [vmem:[#allocation10 + $0x68] sm:$0xff]
    %v2225 = vld [vmem:[#allocation10 + $0x70] sm:$0xff]
    %v2226 = vld [vmem:[#allocation10 + $0x78] sm:$0xff]
    %v2227 = vld [vmem:[#allocation10 + $0x80] sm:$0xff]
    %v2228 = vld [vmem:[#allocation10 + $0x88] sm:$0xff]
    %v2229 = vld [vmem:[#allocation10 + $0x90] sm:$0xff]
    %v2230 = vld [vmem:[#allocation10 + $0x98] sm:$0xff]
    %v2231 = vld [vmem:[#allocation10 + $0xa0] sm:$0xff]
    %v2232 = vld [vmem:[#allocation10 + $0xa8] sm:$0xff]
    %v2233 = vld [vmem:[#allocation10 + $0xb0] sm:$0xff]
    %v2234 = vld [vmem:[#allocation10 + $0xb8] sm:$0xff]
    %v2235 = vld [vmem:[#allocation10 + $0xc0] sm:$0xff]
    %v2236 = vld [vmem:[#allocation10 + $0xc8] sm:$0xff]
    %v2237 = vld [vmem:[#allocation10 + $0xd0] sm:$0xff]
    %v2238 = vld [vmem:[#allocation10 + $0xd8] sm:$0xff]
    %v2239 = vld [vmem:[#allocation10 + $0xe0] sm:$0xff]
    %v2240 = vld [vmem:[#allocation10 + $0xe8] sm:$0xff]
    %v2241 = vld [vmem:[#allocation10 + $0xf0] sm:$0xff]
    %v2242 = vld [vmem:[#allocation10 + $0xf8] sm:$0xff]
    %v2243 = vld [vmem:[%s7] sm:$0x3]
    %v2245 = vlaneseq
    %v2246 = vshrl.u32 %v2245, 7
    %v2247 = vsub.s32 0, %v2246
    %v2248 = vrot.slane %v2243, %v2247
    %v2249 = vlaneseq
    %v2250 = vshrl.u32 %v2249, 7
    %v2251 = vsub.s32 1, %v2250
    %v2252 = vrot.slane %v2243, %v2251
    %v2287 = vunpack.c.l.b16 %v2211
    %v2288 = vunpack.c.h.b16 %v2211
    %v2289 = vunpack.c.l.b16 %v2212
    %v2290 = vunpack.c.h.b16 %v2212
    %v2291 = vunpack.c.l.b16 %v2213
    %v2292 = vunpack.c.h.b16 %v2213
    %v2293 = vunpack.c.l.b16 %v2214
    %v2294 = vunpack.c.h.b16 %v2214
    %v2295 = vunpack.c.l.b16 %v2215
    %v2296 = vunpack.c.h.b16 %v2215
    %v2297 = vunpack.c.l.b16 %v2216
    %v2298 = vunpack.c.h.b16 %v2216
    %v2299 = vunpack.c.l.b16 %v2217
    %v2300 = vunpack.c.h.b16 %v2217
    %v2301 = vunpack.c.l.b16 %v2218
    %v2302 = vunpack.c.h.b16 %v2218
    %v2303 = vunpack.c.l.b16 %v2219
    %v2304 = vunpack.c.h.b16 %v2219
    %v2305 = vunpack.c.l.b16 %v2220
    %v2306 = vunpack.c.h.b16 %v2220
    %v2307 = vunpack.c.l.b16 %v2221
    %v2308 = vunpack.c.h.b16 %v2221
    %v2309 = vunpack.c.l.b16 %v2222
    %v2310 = vunpack.c.h.b16 %v2222
    %v2311 = vunpack.c.l.b16 %v2223
    %v2312 = vunpack.c.h.b16 %v2223
    %v2313 = vunpack.c.l.b16 %v2224
    %v2314 = vunpack.c.h.b16 %v2224
    %v2315 = vunpack.c.l.b16 %v2225
    %v2316 = vunpack.c.h.b16 %v2225
    %v2317 = vunpack.c.l.b16 %v2226
    %v2318 = vunpack.c.h.b16 %v2226
    %v2319 = vunpack.c.l.b16 %v2227
    %v2320 = vunpack.c.h.b16 %v2227
    %v2321 = vunpack.c.l.b16 %v2228
    %v2322 = vunpack.c.h.b16 %v2228
    %v2323 = vunpack.c.l.b16 %v2229
    %v2324 = vunpack.c.h.b16 %v2229
    %v2325 = vunpack.c.l.b16 %v2230
    %v2326 = vunpack.c.h.b16 %v2230
    %v2327 = vunpack.c.l.b16 %v2231
    %v2328 = vunpack.c.h.b16 %v2231
    %v2329 = vunpack.c.l.b16 %v2232
    %v2330 = vunpack.c.h.b16 %v2232
    %v2331 = vunpack.c.l.b16 %v2233
    %v2332 = vunpack.c.h.b16 %v2233
    %v2333 = vunpack.c.l.b16 %v2234
    %v2334 = vunpack.c.h.b16 %v2234
    %v2335 = vunpack.c.l.b16 %v2235
    %v2336 = vunpack.c.h.b16 %v2235
    %v2337 = vunpack.c.l.b16 %v2236
    %v2338 = vunpack.c.h.b16 %v2236
    %v2339 = vunpack.c.l.b16 %v2237
    %v2340 = vunpack.c.h.b16 %v2237
    %v2341 = vunpack.c.l.b16 %v2238
    %v2342 = vunpack.c.h.b16 %v2238
    %v2343 = vunpack.c.l.b16 %v2239
    %v2344 = vunpack.c.h.b16 %v2239
    %v2345 = vunpack.c.l.b16 %v2240
    %v2346 = vunpack.c.h.b16 %v2240
    %v2347 = vunpack.c.l.b16 %v2241
    %v2348 = vunpack.c.h.b16 %v2241
    %v2349 = vunpack.c.l.b16 %v2242
    %v2350 = vunpack.c.h.b16 %v2242
    %v2351 = vpack.c.b16 %v2289, %v2287
    %v2352 = vpack.c.b16 %v2290, %v2288
    %v2353 = vpack.c.b16 %v2293, %v2291
    %v2354 = vpack.c.b16 %v2294, %v2292
    %v2355 = vpack.c.b16 %v2297, %v2295
    %v2356 = vpack.c.b16 %v2298, %v2296
    %v2357 = vpack.c.b16 %v2301, %v2299
    %v2358 = vpack.c.b16 %v2302, %v2300
    %v2359 = vpack.c.b16 %v2305, %v2303
    %v2360 = vpack.c.b16 %v2306, %v2304
    %v2361 = vpack.c.b16 %v2309, %v2307
    %v2362 = vpack.c.b16 %v2310, %v2308
    %v2363 = vpack.c.b16 %v2313, %v2311
    %v2364 = vpack.c.b16 %v2314, %v2312
    %v2365 = vpack.c.b16 %v2317, %v2315
    %v2366 = vpack.c.b16 %v2318, %v2316
    %v2367 = vpack.c.b16 %v2321, %v2319
    %v2368 = vpack.c.b16 %v2322, %v2320
    %v2369 = vpack.c.b16 %v2325, %v2323
    %v2370 = vpack.c.b16 %v2326, %v2324
    %v2371 = vpack.c.b16 %v2329, %v2327
    %v2372 = vpack.c.b16 %v2330, %v2328
    %v2373 = vpack.c.b16 %v2333, %v2331
    %v2374 = vpack.c.b16 %v2334, %v2332
    %v2375 = vpack.c.b16 %v2337, %v2335
    %v2376 = vpack.c.b16 %v2338, %v2336
    %v2377 = vpack.c.b16 %v2341, %v2339
    %v2378 = vpack.c.b16 %v2342, %v2340
    %v2379 = vpack.c.b16 %v2345, %v2343
    %v2380 = vpack.c.b16 %v2346, %v2344
    %v2381 = vpack.c.b16 %v2349, %v2347
    %v2382 = vpack.c.b16 %v2350, %v2348
    %2415 = vmatprep.subr.bf16.mxu0 %v2366
    %2416 = vmatpush1.bf16.msra.mxu0 %v2365
    %2417 = vmatprep.subr.bf16.mxu0 %v2364
    %2418 = vmatpush1.bf16.msra.mxu0 %v2363
    %2419 = vmatprep.subr.bf16.mxu0 %v2362
    %2420 = vmatpush1.bf16.msra.mxu0 %v2361
    %2421 = vmatprep.subr.bf16.mxu0 %v2360
    %2422 = vmatpush1.bf16.msra.mxu0 %v2359
    %2423 = vmatprep.subr.bf16.mxu0 %v2358
    %2424 = vmatpush1.bf16.msra.mxu0 %v2357
    %2425 = vmatprep.subr.bf16.mxu0 %v2356
    %2426 = vmatpush1.bf16.msra.mxu0 %v2355
    %2427 = vmatprep.subr.bf16.mxu0 %v2354
    %2428 = vmatpush1.bf16.msra.mxu0 %v2353
    %2429 = vmatprep.subr.bf16.mxu0 %v2352
    %2430 = vmatpush1.bf16.msra.mxu0 %v2351
    %2431 = vmatprep.subr.bf16.mxu0 %v2382
    %2432 = vmatpush2.bf16.msra.mxu0 %v2381
    %2433 = vmatprep.subr.bf16.mxu0 %v2380
    %2434 = vmatpush2.bf16.msra.mxu0 %v2379
    %2435 = vmatprep.subr.bf16.mxu0 %v2378
    %2436 = vmatpush2.bf16.msra.mxu0 %v2377
    %2437 = vmatprep.subr.bf16.mxu0 %v2376
    %2438 = vmatpush2.bf16.msra.mxu0 %v2375
    %2439 = vmatprep.subr.bf16.mxu0 %v2374
    %2440 = vmatpush2.bf16.msra.mxu0 %v2373
    %2441 = vmatprep.subr.bf16.mxu0 %v2372
    %2442 = vmatpush2.bf16.msra.mxu0 %v2371
    %2443 = vmatprep.subr.bf16.mxu0 %v2370
    %2444 = vmatpush2.bf16.msra.mxu0 %v2369
    %2445 = vmatprep.subr.bf16.mxu0 %v2368
    %2446 = vmatpush2.bf16.msra.mxu0 %v2367
    %2447 = vmatprep.mubr.bf16.mxu0 %v2210
    %2448 = vmatmul.mubr.bf16.gmra.mxu0 %v2209
    %v2449 = vpop.f32.mrf.mxu0
    %v2450 = vadd.f32 %v2248, %v2449
    %v2451 = vpop.f32.mrf.mxu0
    %v2452 = vadd.f32 %v2252, %v2451
    %v2453 = vpop.f32.mrf.mxu0
    %v2454 = vadd.f32 %v2248, %v2453
    %v2455 = vpop.f32.mrf.mxu0
    %v2456 = vadd.f32 %v2252, %v2455
    %2457 = vdwg.mxu0
    %v2458 = vmul.f32 %v1178, %v2450
    %v2459 = vmul.f32 %v1179, %v2452
    %v2460 = vmul.f32 %v1180, %v2454
    %v2461 = vmul.f32 %v1181, %v2456
    %v2462 = vadd.f32 %v2458, %v2459
    %2463 = vadd.xlane.f32.xlu0 %v2462
    %v2464 = vpop.xlane.xlu0 %2463
    %v2465 = vadd.f32 %v2460, %v2461
    %2466 = vadd.xlane.f32.xlu0 %v2465
    %v2467 = vpop.xlane.xlu0 %2466
    %v2468 = vxor.u32 %v2464, 2147483648
    %v2469 = vxor.u32 %v2467, 2147483648
    %v2470 = vmul.f32 %v2468, 1.442695
    %v2471 = vpow.pop %v2470
    %v2472 = vmul.f32 %v2469, 1.442695
    %v2473 = vpow.pop %v2472
    %v2474 = vadd.f32 %v2471, 1.0
    %v2475 = vadd.f32 %v2473, 1.0
    %v2476 = vrcp.pop %v2474
    %v2477 = vmul.f32 1.0, %v2476
    %v2478 = vrcp.pop %v2475
    %v2479 = vmul.f32 1.0, %v2478
    %vm2480 = vcmask 7168
    %2481 = vst.msk [vmem:[#allocation12] sm:$0xff] %vm2480, %v2477
    %2482 = vst.msk [vmem:[#allocation12 + $0x8] sm:$0xff] %vm2480, %v2479
    // Predicated region
    $region58: #{_forward_impl.1} parent=1 // pred_check
      _
    $region59: #{_forward_impl.1} parent=1 // pred_check_branch
      %2484 = sbr.rel (0) target = $region61
    $region60: #{_forward_impl.1} parent=1 // pred_region
      // Predicated region
      $region62: #{_forward_impl.1} parent=60 // pred_check
        _
      $region63: #{_forward_impl.1} parent=60 // pred_check_branch
        %2486 = sbr.rel (0) target = $region65
      $region64: #{_forward_impl.1} parent=60 // pred_region
        // Predicated region
        $region66: #{_forward_impl.1} parent=64 // pred_check
          _
        $region67: #{_forward_impl.1} parent=64 // pred_check_branch
          %2488 = sbr.rel (0) target = $region69
        $region68: #{_forward_impl.1} parent=64 // pred_region
          // Predicated region
          $region81: #{_forward_impl.1} parent=68 // pred_check
            _
          $region82: #{_forward_impl.1} parent=68 // pred_check_branch
            %2504 = sbr.rel (0) target = $region84
          $region83: #{_forward_impl.1} parent=68 // pred_region
            loop: start=0, step=1, limit=1
            $region85: #{_forward_impl.1} parent=83 // loop_pre_header
              _
            $region86: #{_forward_impl.1} parent=83 // loop_header
              %s2506 = sphi 0, %s2510
              %p2507 = scmp.ge.s32.totalorder %s2506, 1
              %s2511 = sphi [#allocation12], [#allocation12]
              %s2512 = sphi %s8, %s8
            $region87: #{_forward_impl.1} parent=83 // loop_header_branch
              %2509 = sbr.rel (%p2507) target = $region91
            $region88: #{_forward_impl.1} parent=83 // loop_body
              %v2513 = vld [vmem:[%s2511] sm:$0xff]
              %2514 = vst [vmem:[%s2512] sm:$0xff] %v2513
            $region89: #{_forward_impl.1} parent=83 // loop_footer
              %s2510 = sadd.s32 1, %s2506
            $region90: #{_forward_impl.1} parent=83 // loop_footer_branch
              %2505 = sbr.rel target = $region86
            $region91: #{_forward_impl.1} parent=83 // loop_exit
              _
          $region84: #{_forward_impl.1} parent=68 // pred_fallthru
            _
          // Predicated region
          $region92: #{_forward_impl.1} parent=68 // pred_check
            _
          $region93: #{_forward_impl.1} parent=68 // pred_check_branch
            %2516 = sbr.rel target = $region95
          $region94: #{_forward_impl.1} parent=68 // pred_region
            _
          $region95: #{_forward_impl.1} parent=68 // pred_fallthru
            _
        $region69: #{_forward_impl.1} parent=64 // pred_fallthru
          _
        // Predicated region
        $region70: #{_forward_impl.1} parent=64 // pred_check
          _
        $region71: #{_forward_impl.1} parent=64 // pred_check_branch
          %2490 = sbr.rel target = $region73
        $region72: #{_forward_impl.1} parent=64 // pred_region
          %s2492 = ssub.s32 256, 1
          loop: start=0, step=1, limit=1
          $region74: #{_forward_impl.1} parent=72 // loop_pre_header
            _
          $region75: #{_forward_impl.1} parent=72 // loop_header
            %s2494 = sphi 0, %s2498
            %p2495 = scmp.ge.s32.totalorder %s2494, 1
            %s2499 = sphi [#allocation12], [#allocation12]
            %s2500 = sphi %s8, %s8
          $region76: #{_forward_impl.1} parent=72 // loop_header_branch
            %2497 = sbr.rel (%p2495) target = $region80
          $region77: #{_forward_impl.1} parent=72 // loop_body
            %v2501 = vld [vmem:[%s2499] sm:%s2492]
            %2502 = vst [vmem:[%s2500] sm:%s2492] %v2501
          $region78: #{_forward_impl.1} parent=72 // loop_footer
            %s2498 = sadd.s32 1, %s2494
          $region79: #{_forward_impl.1} parent=72 // loop_footer_branch
            %2493 = sbr.rel target = $region75
          $region80: #{_forward_impl.1} parent=72 // loop_exit
            _
        $region73: #{_forward_impl.1} parent=64 // pred_fallthru
          _
      $region65: #{_forward_impl.1} parent=60 // pred_fallthru
        _
      %2517 = vnop
    $region61: #{_forward_impl.1} parent=1 // pred_fallthru
      _
    // Predicated region
    $region96: #{_forward_impl.1} parent=1 // pred_check
      _
    $region97: #{_forward_impl.1} parent=1 // pred_check_branch
      %2519 = sbr.rel (0) target = $region99
    $region98: #{_forward_impl.1} parent=1 // pred_region
      _
    $region99: #{_forward_impl.1} parent=1 // pred_fallthru
      _
    %2520 = vsyncpa [#allocation3], 1
    %2521 = vsyncpa [#allocation5], 1
    %2522 = vsyncpa [#allocation8], 1
    %2523 = vsyncpa [#allocation11], 1

</llo_original>
